<compile_context>
chip_gen: v5e
topology: v5e:2x2
jax: 0.10.0
libtpu: 0.0.40
codegen_flags: <defaults>
</compile_context>

<pallas_src>
import functools

import jax
import jax.numpy as jnp
from jax import lax
from jax.experimental import pallas as pl
from jax.experimental.pallas import tpu as pltpu


# --------------------------------------------------------------------------
# Fused kernel (one grid step == one sequence b):
#   hidden MLP -> folded (prev_a, prev_r) wrap -> LSTM over time -> logits
# --------------------------------------------------------------------------
def _fused_forward_kernel(obs_ref, ar_ref, h0_ref, c0_ref,
                          w1_ref, b1_ref, g1_ref, be1_ref,
                          w2_ref, b2_ref, g2_ref, be2_ref,
                          wih_h_ref, wih_ar_ref, whh_ref, bl_ref,
                          wlog_ref, blog_ref,
                          logits_ref, h_out_ref, c_out_ref,
                          hs_scratch):
    eps = 1e-5                      # torch nn.LayerNorm default
    H = h0_ref.shape[-1]            # cell size
    T = obs_ref.shape[0]            # timesteps for this sequence

    x = obs_ref[...].astype(jnp.float32)                                  # [T, D]

    # ---- hidden stack: (Linear -> Tanh -> LayerNorm) x 2 (biased var, like torch) ----
    h = jnp.dot(x, w1_ref[...], preferred_element_type=jnp.float32) + b1_ref[...]
    h = jnp.tanh(h)
    mu = jnp.mean(h, axis=-1, keepdims=True)
    var = jnp.mean((h - mu) ** 2, axis=-1, keepdims=True)
    h = (h - mu) * lax.rsqrt(var + eps) * g1_ref[...] + be1_ref[...]

    h = jnp.dot(h, w2_ref[...], preferred_element_type=jnp.float32) + b2_ref[...]
    h = jnp.tanh(h)
    mu = jnp.mean(h, axis=-1, keepdims=True)
    var = jnp.mean((h - mu) ** 2, axis=-1, keepdims=True)
    h = (h - mu) * lax.rsqrt(var + eps) * g2_ref[...] + be2_ref[...]      # [T, H2]

    # ---- "concat" with [prev_action, prev_reward] folded into the input-gate matmul ----
    # concat([h, a, r], 1) @ W_ih == h @ W_h + [a, r] @ W_ar
    ar = ar_ref[...].astype(jnp.float32)                                  # [T, A+1]
    gx = (jnp.dot(h, wih_h_ref[...], preferred_element_type=jnp.float32)
          + jnp.dot(ar, wih_ar_ref[...], preferred_element_type=jnp.float32)
          + bl_ref[...])                                                  # [T, 4H]

    # ---- LSTM recurrence over time, fully unrolled in-kernel (T static) ----
    # PyTorch gate order: i, f, g, o.
    whh = whh_ref[...].astype(jnp.float32)
    h_t = h0_ref[...].astype(jnp.float32)                                 # [1, H]
    c_t = c0_ref[...].astype(jnp.float32)                                 # [1, H]

    for t in range(T):
        # gx[t:t+1] is a static leading-axis (sublane) slice — contiguous.
        gates = gx[t:t + 1, :] + jnp.dot(h_t, whh,
                                         preferred_element_type=jnp.float32)  # [1, 4H]
        # Full-vreg activation: 2 EUP pushes per step instead of 4.
        sg = jax.nn.sigmoid(gates)
        th = jnp.tanh(gates)
        i = sg[:, 0 * H:1 * H]
        f = sg[:, 1 * H:2 * H]
        g = th[:, 2 * H:3 * H]
        o = sg[:, 3 * H:4 * H]
        c_t = f * c_t + i * g
        h_t = o * jnp.tanh(c_t)
        # Per-step write into VMEM scratch keeps vreg live ranges flat in T.
        hs_scratch[pl.ds(t, 1), :] = h_t

    # New recurrent state (written unconditionally).
    h_out_ref[...] = h_t.astype(h_out_ref.dtype)
    c_out_ref[...] = c_t.astype(c_out_ref.dtype)

    # ---- logits branch: one matmul from scratch, one lane-dense (128-wide) store ----
    hs = hs_scratch[...]                                                  # [T, H]
    logits_ref[...] = (jnp.dot(hs, wlog_ref[...], preferred_element_type=jnp.float32)
                       + blog_ref[...]).astype(logits_ref.dtype)


def fused_forward(obs, prev_ar, h0, c0, p):
    BT, D = obs.shape
    B, H = h0.shape
    T = BT // B
    A1 = prev_ar.shape[1]
    H1 = p["w1"].shape[1]
    H2 = p["w2"].shape[1]
    NO = p["w_log"].shape[1]
    NO_PAD = max(128, ((NO + 127) // 128) * 128)   # lane-dense output width

    # Zero-pad the logits weights to NO_PAD lanes (tiny, outside the kernel).
    w_log_pad = jnp.zeros((H, NO_PAD), jnp.float32).at[:, :NO].set(p["w_log"])
    b_log_pad = jnp.zeros((1, NO_PAD), jnp.float32).at[:, :NO].set(p["b_log"])

    # B-major rows -> [B, T, ...] (pure reshape; within a sequence rows are time-ordered).
    obs3 = obs.reshape(B, T, D)
    ar3 = prev_ar.reshape(B, T, A1)
    h03 = h0.reshape(B, 1, H)
    c03 = c0.reshape(B, 1, H)

    seq = lambda b: (b, 0, 0)     # per-sequence blocks
    rep = lambda b: (0, 0)        # weights: same block every grid step (stay resident)

    logits_pad, h_n, c_n = pl.pallas_call(
        _fused_forward_kernel,
        out_shape=(
            jax.ShapeDtypeStruct((B, T, NO_PAD), jnp.float32),
            jax.ShapeDtypeStruct((B, 1, H), jnp.float32),
            jax.ShapeDtypeStruct((B, 1, H), jnp.float32),
        ),
        grid_spec=pltpu.PrefetchScalarGridSpec(
            num_scalar_prefetch=0,
            grid=(B,),
            in_specs=[
                pl.BlockSpec((None, T, D), seq),        # obs           [T, D]
                pl.BlockSpec((None, T, A1), seq),       # [prev_a, prev_r] [T, A+1]
                pl.BlockSpec((None, 1, H), seq),        # h0            [1, H]
                pl.BlockSpec((None, 1, H), seq),        # c0            [1, H]
                pl.BlockSpec((D, H1), rep), pl.BlockSpec((1, H1), rep),
                pl.BlockSpec((1, H1), rep), pl.BlockSpec((1, H1), rep),
                pl.BlockSpec((H1, H2), rep), pl.BlockSpec((1, H2), rep),
                pl.BlockSpec((1, H2), rep), pl.BlockSpec((1, H2), rep),
                pl.BlockSpec((H2, 4 * H), rep),         # W_ih (hidden rows)
                pl.BlockSpec((A1, 4 * H), rep),         # W_ih (prev_a + prev_r rows)
                pl.BlockSpec((H, 4 * H), rep),          # W_hh
                pl.BlockSpec((1, 4 * H), rep),          # b_ih + b_hh
                pl.BlockSpec((H, NO_PAD), rep),         # logits W (lane-padded)
                pl.BlockSpec((1, NO_PAD), rep),         # logits b (lane-padded)
            ],
            out_specs=(
                pl.BlockSpec((None, T, NO_PAD), seq),
                pl.BlockSpec((None, 1, H), seq),
                pl.BlockSpec((None, 1, H), seq),
            ),
            scratch_shapes=[pltpu.VMEM((T, H), jnp.float32)],   # h-sequence buffer
        ),
        compiler_params=pltpu.CompilerParams(
            dimension_semantics=("parallel",),          # shards sequences across TCs on v7x
            vmem_limit_bytes=32 * 1024 * 1024),
    )(obs3, ar3, h03, c03,
      p["w1"], p["b1"], p["g1"], p["be1"],
      p["w2"], p["b2"], p["g2"], p["be2"],
      p["w_ih_h"], p["w_ih_ar"], p["w_hh"], p["b_lstm"],
      w_log_pad, b_log_pad)

    logits = logits_pad.reshape(BT, NO_PAD)[:, :NO]
    return logits, h_n.reshape(B, H), c_n.reshape(B, H)


# --------------------------------------------------------------------------
# Parameter construction (deterministic, synthetic — no checkpoint loading)
# --------------------------------------------------------------------------
def normc_init(key, in_size, out_size, std=1.0):
    # RLlib torch_normc_initializer: normal(0,1) then normalize over the input dim.
    w = jax.random.normal(key, (in_size, out_size), dtype=jnp.float32)
    return w * std / jnp.sqrt(jnp.sum(w * w, axis=0, keepdims=True))


def make_params(key, obs_size, hidden_sizes, action_dim, cell_size, num_outputs):
    H1, H2 = hidden_sizes
    lstm_in = H2 + action_dim + 1
    keys = jax.random.split(key, 8)
    p = {}
    # hidden stack
    p["w1"] = normc_init(keys[0], obs_size, H1, 1.0)
    p["b1"] = jnp.zeros((1, H1), jnp.float32)
    p["g1"] = jnp.ones((1, H1), jnp.float32)
    p["be1"] = jnp.zeros((1, H1), jnp.float32)
    p["w2"] = normc_init(keys[1], H1, H2, 1.0)
    p["b2"] = jnp.zeros((1, H2), jnp.float32)
    p["g2"] = jnp.ones((1, H2), jnp.float32)
    p["be2"] = jnp.zeros((1, H2), jnp.float32)
    # LSTM (torch default uniform init), stored transposed ([in, 4H]) and split
    # along the input dim so the kernel can fold the concat into the matmul.
    k = 1.0 / jnp.sqrt(cell_size)
    w_ih = jax.random.uniform(keys[2], (lstm_in, 4 * cell_size), jnp.float32, -k, k)
    p["w_ih_h"] = w_ih[:H2]                      # hidden rows
    p["w_ih_ar"] = w_ih[H2:]                     # [prev_action, prev_reward] rows
    p["w_hh"] = jax.random.uniform(keys[3], (cell_size, 4 * cell_size), jnp.float32, -k, k)
    b_ih = jax.random.uniform(keys[4], (4 * cell_size,), jnp.float32, -k, k)
    b_hh = jax.random.uniform(keys[5], (4 * cell_size,), jnp.float32, -k, k)
    p["b_lstm"] = (b_ih + b_hh).reshape(1, 4 * cell_size)
    # logits branch (normc with std=1e-12, no activation)
    p["w_log"] = normc_init(keys[6], cell_size, num_outputs, 1e-12)
    p["b_log"] = jnp.zeros((1, num_outputs), jnp.float32)
    return p
    # TODO(synk): _value_branch / value_function() is not part of forward() and is omitted.


# --------------------------------------------------------------------------
# Full forward — single fused Pallas call (T is derived from BT // B, matching
# RLlib's max_seq_len = obs.shape[0] // len(seq_lens)).
# --------------------------------------------------------------------------
@functools.partial(jax.jit, static_argnames=("action_dim",))
def model_forward(params, obs, prev_actions, prev_rewards, state_h, state_c,
                  *, action_dim):
    # Continuous Box action space -> prev actions used as plain floats.
    # TODO(synk): Discrete/MultiDiscrete one-hot branch of prev_actions not implemented.
    # TODO(synk): seq_lens padding is not masked — matches the reference, which feeds
    # the padded batch straight into nn.LSTM without packing.
    prev_a = prev_actions.reshape(-1, action_dim).astype(jnp.float32)
    prev_r = prev_rewards.reshape(-1, 1).astype(jnp.float32)
    prev_ar = jnp.concatenate([prev_a, prev_r], axis=1)
    logits, h_n, c_n = fused_forward(obs.astype(jnp.float32), prev_ar,
                                     state_h, state_c, params)
    return logits, (h_n, c_n)


if __name__ == "__main__":
    # Small shapes implied by the module's forward pass.
    OBS_SIZE = 8
    HIDDEN_SIZES = [32, 32]
    CELL_SIZE = 32
    ACTION_DIM = 4          # continuous Box(4,)
    NUM_OUTPUTS = 8         # e.g. 2 * action_dim (diag-gaussian)
    B, T = 2, 8
    BT = B * T

    key = jax.random.PRNGKey(0)
    kp, kobs, kact, krew = jax.random.split(key, 4)

    params = make_params(kp, OBS_SIZE, HIDDEN_SIZES, ACTION_DIM, CELL_SIZE, NUM_OUTPUTS)

    obs = jax.random.normal(kobs, (BT, OBS_SIZE), jnp.float32)
    prev_actions = jax.random.normal(kact, (BT, ACTION_DIM), jnp.float32)
    prev_rewards = jax.random.normal(krew, (BT,), jnp.float32)
    # get_initial_state(): zeros of shape [cell_size] per sequence
    state_h = jnp.zeros((B, CELL_SIZE), jnp.float32)
    state_c = jnp.zeros((B, CELL_SIZE), jnp.float32)

    logits, (h_n, c_n) = model_forward(
        params, obs, prev_actions, prev_rewards, state_h, state_c,
        action_dim=ACTION_DIM)

    jax.block_until_ready((logits, h_n, c_n))
    assert logits.shape == (BT, NUM_OUTPUTS)
    assert h_n.shape == (B, CELL_SIZE) and c_n.shape == (B, CELL_SIZE)
    assert bool(jnp.all(jnp.isfinite(logits)))
    assert bool(jnp.all(jnp.isfinite(h_n))) and bool(jnp.all(jnp.isfinite(c_n)))
    print("KERNEL_OK")
</pallas_src>

<mosaic_0001>
module attributes {stable_mosaic.version = 11 : i64} {
  func.func @_fused_forward_kernel(%arg0: i32, %arg1: memref<1x8x8xf32, #tpu.memory_space<vmem>>, %arg2: memref<1x8x5xf32, #tpu.memory_space<vmem>>, %arg3: memref<1x1x32xf32, #tpu.memory_space<vmem>>, %arg4: memref<1x1x32xf32, #tpu.memory_space<vmem>>, %arg5: memref<8x32xf32, #tpu.memory_space<vmem>>, %arg6: memref<1x32xf32, #tpu.memory_space<vmem>>, %arg7: memref<1x32xf32, #tpu.memory_space<vmem>>, %arg8: memref<1x32xf32, #tpu.memory_space<vmem>>, %arg9: memref<32x32xf32, #tpu.memory_space<vmem>>, %arg10: memref<1x32xf32, #tpu.memory_space<vmem>>, %arg11: memref<1x32xf32, #tpu.memory_space<vmem>>, %arg12: memref<1x32xf32, #tpu.memory_space<vmem>>, %arg13: memref<32x128xf32, #tpu.memory_space<vmem>>, %arg14: memref<5x128xf32, #tpu.memory_space<vmem>>, %arg15: memref<32x128xf32, #tpu.memory_space<vmem>>, %arg16: memref<1x128xf32, #tpu.memory_space<vmem>>, %arg17: memref<32x128xf32, #tpu.memory_space<vmem>>, %arg18: memref<1x128xf32, #tpu.memory_space<vmem>>, %arg19: memref<1x8x128xf32, #tpu.memory_space<vmem>>, %arg20: memref<1x1x32xf32, #tpu.memory_space<vmem>>, %arg21: memref<1x1x32xf32, #tpu.memory_space<vmem>>, %arg22: memref<8x32xf32, #tpu.memory_space<vmem>>) attributes {dimension_semantics = [#tpu.dimension_semantics<parallel>], iteration_bounds = array<i64: 2>, scalar_prefetch = 0 : i64, scratch_operands = 1 : i64, tpu.core_type = #tpu.core_type<tc>, window_params = [{transform_indices = @transform_0, window_bounds = array<i64: 1, 8, 8>}, {transform_indices = @transform_1, window_bounds = array<i64: 1, 8, 5>}, {transform_indices = @transform_2, window_bounds = array<i64: 1, 1, 32>}, {transform_indices = @transform_3, window_bounds = array<i64: 1, 1, 32>}, {pipeline_mode = #tpu.pipeline_mode<synchronous>, transform_indices = @transform_4, window_bounds = array<i64: 8, 32>}, {pipeline_mode = #tpu.pipeline_mode<synchronous>, transform_indices = @transform_5, window_bounds = array<i64: 1, 32>}, {pipeline_mode = #tpu.pipeline_mode<synchronous>, transform_indices = @transform_6, window_bounds = array<i64: 1, 32>}, {pipeline_mode = #tpu.pipeline_mode<synchronous>, transform_indices = @transform_7, window_bounds = array<i64: 1, 32>}, {pipeline_mode = #tpu.pipeline_mode<synchronous>, transform_indices = @transform_8, window_bounds = array<i64: 32, 32>}, {pipeline_mode = #tpu.pipeline_mode<synchronous>, transform_indices = @transform_9, window_bounds = array<i64: 1, 32>}, {pipeline_mode = #tpu.pipeline_mode<synchronous>, transform_indices = @transform_10, window_bounds = array<i64: 1, 32>}, {pipeline_mode = #tpu.pipeline_mode<synchronous>, transform_indices = @transform_11, window_bounds = array<i64: 1, 32>}, {pipeline_mode = #tpu.pipeline_mode<synchronous>, transform_indices = @transform_12, window_bounds = array<i64: 32, 128>}, {pipeline_mode = #tpu.pipeline_mode<synchronous>, transform_indices = @transform_13, window_bounds = array<i64: 5, 128>}, {pipeline_mode = #tpu.pipeline_mode<synchronous>, transform_indices = @transform_14, window_bounds = array<i64: 32, 128>}, {pipeline_mode = #tpu.pipeline_mode<synchronous>, transform_indices = @transform_15, window_bounds = array<i64: 1, 128>}, {pipeline_mode = #tpu.pipeline_mode<synchronous>, transform_indices = @transform_16, window_bounds = array<i64: 32, 128>}, {pipeline_mode = #tpu.pipeline_mode<synchronous>, transform_indices = @transform_17, window_bounds = array<i64: 1, 128>}, {transform_indices = @transform_18, window_bounds = array<i64: 1, 8, 128>}, {transform_indices = @transform_19, window_bounds = array<i64: 1, 1, 32>}, {transform_indices = @transform_20, window_bounds = array<i64: 1, 1, 32>}]} {
    %c0 = arith.constant 0 : index
    %c0_0 = arith.constant 0 : index
    %c0_1 = arith.constant 0 : index
    %0 = vector.load %arg1[%c0, %c0_0, %c0_1] : memref<1x8x8xf32, #tpu.memory_space<vmem>>, vector<1x8x8xf32>
    %1 = vector.shape_cast %0 : vector<1x8x8xf32> to vector<8x8xf32>
    %c0_2 = arith.constant 0 : index
    %c0_3 = arith.constant 0 : index
    %2 = vector.load %arg5[%c0_2, %c0_3] : memref<8x32xf32, #tpu.memory_space<vmem>>, vector<8x32xf32>
    %cst = arith.constant dense<0.000000e+00> : vector<8x32xf32>
    %3 = tpu.matmul %1, %2, %cst {dimension_numbers = #tpu.dot_dimension_numbers<[1], [0], [0], [1], [0, 0, 1, 1], [], []>} : vector<8x8xf32>, vector<8x32xf32>, vector<8x32xf32> -> vector<8x32xf32>
    %c0_4 = arith.constant 0 : index
    %c0_5 = arith.constant 0 : index
    %4 = vector.load %arg6[%c0_4, %c0_5] : memref<1x32xf32, #tpu.memory_space<vmem>>, vector<1x32xf32>
    %5 = vector.broadcast %4 : vector<1x32xf32> to vector<8x32xf32>
    %6 = arith.addf %3, %5 : vector<8x32xf32>
    %7 = math.tanh %6 : vector<8x32xf32>
    %cst_6 = arith.constant dense<0.000000e+00> : vector<8xf32>
    %8 = vector.multi_reduction <add>, %7, %cst_6 [1] : vector<8x32xf32> to vector<8xf32>
    %9 = vector.shape_cast %8 : vector<8xf32> to vector<8x1xf32>
    %cst_7 = arith.constant 3.200000e+01 : f32
    %10 = vector.broadcast %cst_7 : f32 to vector<8x1xf32>
    %11 = arith.divf %9, %10 : vector<8x1xf32>
    %12 = vector.broadcast %11 : vector<8x1xf32> to vector<8x32xf32>
    %13 = arith.subf %7, %12 : vector<8x32xf32>
    %14 = arith.mulf %13, %13 : vector<8x32xf32>
    %cst_8 = arith.constant dense<0.000000e+00> : vector<8xf32>
    %15 = vector.multi_reduction <add>, %14, %cst_8 [1] : vector<8x32xf32> to vector<8xf32>
    %16 = vector.shape_cast %15 : vector<8xf32> to vector<8x1xf32>
    %cst_9 = arith.constant 3.200000e+01 : f32
    %17 = vector.broadcast %cst_9 : f32 to vector<8x1xf32>
    %18 = arith.divf %16, %17 : vector<8x1xf32>
    %19 = vector.broadcast %11 : vector<8x1xf32> to vector<8x32xf32>
    %20 = arith.subf %7, %19 : vector<8x32xf32>
    %cst_10 = arith.constant 9.99999974E-6 : f32
    %21 = vector.broadcast %cst_10 : f32 to vector<8x1xf32>
    %22 = arith.addf %18, %21 : vector<8x1xf32>
    %23 = math.rsqrt %22 : vector<8x1xf32>
    %24 = vector.broadcast %23 : vector<8x1xf32> to vector<8x32xf32>
    %25 = arith.mulf %20, %24 : vector<8x32xf32>
    %c0_11 = arith.constant 0 : index
    %c0_12 = arith.constant 0 : index
    %26 = vector.load %arg7[%c0_11, %c0_12] : memref<1x32xf32, #tpu.memory_space<vmem>>, vector<1x32xf32>
    %27 = vector.broadcast %26 : vector<1x32xf32> to vector<8x32xf32>
    %28 = arith.mulf %25, %27 : vector<8x32xf32>
    %c0_13 = arith.constant 0 : index
    %c0_14 = arith.constant 0 : index
    %29 = vector.load %arg8[%c0_13, %c0_14] : memref<1x32xf32, #tpu.memory_space<vmem>>, vector<1x32xf32>
    %30 = vector.broadcast %29 : vector<1x32xf32> to vector<8x32xf32>
    %31 = arith.addf %28, %30 : vector<8x32xf32>
    %c0_15 = arith.constant 0 : index
    %c0_16 = arith.constant 0 : index
    %32 = vector.load %arg9[%c0_15, %c0_16] : memref<32x32xf32, #tpu.memory_space<vmem>>, vector<32x32xf32>
    %cst_17 = arith.constant dense<0.000000e+00> : vector<8x32xf32>
    %33 = tpu.matmul %31, %32, %cst_17 {dimension_numbers = #tpu.dot_dimension_numbers<[1], [0], [0], [1], [0, 0, 1, 1], [], []>} : vector<8x32xf32>, vector<32x32xf32>, vector<8x32xf32> -> vector<8x32xf32>
    %c0_18 = arith.constant 0 : index
    %c0_19 = arith.constant 0 : index
    %34 = vector.load %arg10[%c0_18, %c0_19] : memref<1x32xf32, #tpu.memory_space<vmem>>, vector<1x32xf32>
    %35 = vector.broadcast %34 : vector<1x32xf32> to vector<8x32xf32>
    %36 = arith.addf %33, %35 : vector<8x32xf32>
    %37 = math.tanh %36 : vector<8x32xf32>
    %cst_20 = arith.constant dense<0.000000e+00> : vector<8xf32>
    %38 = vector.multi_reduction <add>, %37, %cst_20 [1] : vector<8x32xf32> to vector<8xf32>
    %39 = vector.shape_cast %38 : vector<8xf32> to vector<8x1xf32>
    %cst_21 = arith.constant 3.200000e+01 : f32
    %40 = vector.broadcast %cst_21 : f32 to vector<8x1xf32>
    %41 = arith.divf %39, %40 : vector<8x1xf32>
    %42 = vector.broadcast %41 : vector<8x1xf32> to vector<8x32xf32>
    %43 = arith.subf %37, %42 : vector<8x32xf32>
    %44 = arith.mulf %43, %43 : vector<8x32xf32>
    %cst_22 = arith.constant dense<0.000000e+00> : vector<8xf32>
    %45 = vector.multi_reduction <add>, %44, %cst_22 [1] : vector<8x32xf32> to vector<8xf32>
    %46 = vector.shape_cast %45 : vector<8xf32> to vector<8x1xf32>
    %cst_23 = arith.constant 3.200000e+01 : f32
    %47 = vector.broadcast %cst_23 : f32 to vector<8x1xf32>
    %48 = arith.divf %46, %47 : vector<8x1xf32>
    %49 = vector.broadcast %41 : vector<8x1xf32> to vector<8x32xf32>
    %50 = arith.subf %37, %49 : vector<8x32xf32>
    %cst_24 = arith.constant 9.99999974E-6 : f32
    %51 = vector.broadcast %cst_24 : f32 to vector<8x1xf32>
    %52 = arith.addf %48, %51 : vector<8x1xf32>
    %53 = math.rsqrt %52 : vector<8x1xf32>
    %54 = vector.broadcast %53 : vector<8x1xf32> to vector<8x32xf32>
    %55 = arith.mulf %50, %54 : vector<8x32xf32>
    %c0_25 = arith.constant 0 : index
    %c0_26 = arith.constant 0 : index
    %56 = vector.load %arg11[%c0_25, %c0_26] : memref<1x32xf32, #tpu.memory_space<vmem>>, vector<1x32xf32>
    %57 = vector.broadcast %56 : vector<1x32xf32> to vector<8x32xf32>
    %58 = arith.mulf %55, %57 : vector<8x32xf32>
    %c0_27 = arith.constant 0 : index
    %c0_28 = arith.constant 0 : index
    %59 = vector.load %arg12[%c0_27, %c0_28] : memref<1x32xf32, #tpu.memory_space<vmem>>, vector<1x32xf32>
    %60 = vector.broadcast %59 : vector<1x32xf32> to vector<8x32xf32>
    %61 = arith.addf %58, %60 : vector<8x32xf32>
    %c0_29 = arith.constant 0 : index
    %c0_30 = arith.constant 0 : index
    %c0_31 = arith.constant 0 : index
    %62 = vector.load %arg2[%c0_29, %c0_30, %c0_31] : memref<1x8x5xf32, #tpu.memory_space<vmem>>, vector<1x8x5xf32>
    %63 = vector.shape_cast %62 : vector<1x8x5xf32> to vector<8x5xf32>
    %c0_32 = arith.constant 0 : index
    %c0_33 = arith.constant 0 : index
    %64 = vector.load %arg13[%c0_32, %c0_33] : memref<32x128xf32, #tpu.memory_space<vmem>>, vector<32x128xf32>
    %cst_34 = arith.constant dense<0.000000e+00> : vector<8x128xf32>
    %65 = tpu.matmul %61, %64, %cst_34 {dimension_numbers = #tpu.dot_dimension_numbers<[1], [0], [0], [1], [0, 0, 1, 1], [], []>} : vector<8x32xf32>, vector<32x128xf32>, vector<8x128xf32> -> vector<8x128xf32>
    %c0_35 = arith.constant 0 : index
    %c0_36 = arith.constant 0 : index
    %66 = vector.load %arg14[%c0_35, %c0_36] : memref<5x128xf32, #tpu.memory_space<vmem>>, vector<5x128xf32>
    %cst_37 = arith.constant dense<0.000000e+00> : vector<8x128xf32>
    %67 = tpu.matmul %63, %66, %cst_37 {dimension_numbers = #tpu.dot_dimension_numbers<[1], [0], [0], [1], [0, 0, 1, 1], [], []>} : vector<8x5xf32>, vector<5x128xf32>, vector<8x128xf32> -> vector<8x128xf32>
    %68 = arith.addf %65, %67 : vector<8x128xf32>
    %c0_38 = arith.constant 0 : index
    %c0_39 = arith.constant 0 : index
    %69 = vector.load %arg16[%c0_38, %c0_39] : memref<1x128xf32, #tpu.memory_space<vmem>>, vector<1x128xf32>
    %70 = vector.broadcast %69 : vector<1x128xf32> to vector<8x128xf32>
    %71 = arith.addf %68, %70 : vector<8x128xf32>
    %c0_40 = arith.constant 0 : index
    %c0_41 = arith.constant 0 : index
    %72 = vector.load %arg15[%c0_40, %c0_41] : memref<32x128xf32, #tpu.memory_space<vmem>>, vector<32x128xf32>
    %c0_42 = arith.constant 0 : index
    %c0_43 = arith.constant 0 : index
    %c0_44 = arith.constant 0 : index
    %73 = vector.load %arg3[%c0_42, %c0_43, %c0_44] : memref<1x1x32xf32, #tpu.memory_space<vmem>>, vector<1x1x32xf32>
    %74 = vector.shape_cast %73 : vector<1x1x32xf32> to vector<1x32xf32>
    %c0_45 = arith.constant 0 : index
    %c0_46 = arith.constant 0 : index
    %c0_47 = arith.constant 0 : index
    %75 = vector.load %arg4[%c0_45, %c0_46, %c0_47] : memref<1x1x32xf32, #tpu.memory_space<vmem>>, vector<1x1x32xf32>
    %76 = vector.shape_cast %75 : vector<1x1x32xf32> to vector<1x32xf32>
    %77 = vector.extract_strided_slice %71 {offsets = [0, 0], sizes = [1, 128], strides = [1, 1]} : vector<8x128xf32> to vector<1x128xf32>
    %cst_48 = arith.constant dense<0.000000e+00> : vector<1x128xf32>
    %78 = tpu.matmul %74, %72, %cst_48 {dimension_numbers = #tpu.dot_dimension_numbers<[1], [0], [0], [1], [0, 0, 1, 1], [], []>} : vector<1x32xf32>, vector<32x128xf32>, vector<1x128xf32> -> vector<1x128xf32>
    %79 = arith.addf %77, %78 : vector<1x128xf32>
    %80 = arith.negf %79 : vector<1x128xf32>
    %81 = math.exp %80 : vector<1x128xf32>
    %cst_49 = arith.constant 1.000000e+00 : f32
    %82 = vector.broadcast %cst_49 : f32 to vector<1x128xf32>
    %83 = arith.addf %82, %81 : vector<1x128xf32>
    %84 = arith.divf %82, %83 : vector<1x128xf32>
    %85 = math.tanh %79 : vector<1x128xf32>
    %86 = vector.extract_strided_slice %84 {offsets = [0, 0], sizes = [1, 32], strides = [1, 1]} : vector<1x128xf32> to vector<1x32xf32>
    %87 = vector.extract_strided_slice %84 {offsets = [0, 32], sizes = [1, 32], strides = [1, 1]} : vector<1x128xf32> to vector<1x32xf32>
    %88 = vector.extract_strided_slice %85 {offsets = [0, 64], sizes = [1, 32], strides = [1, 1]} : vector<1x128xf32> to vector<1x32xf32>
    %89 = vector.extract_strided_slice %84 {offsets = [0, 96], sizes = [1, 32], strides = [1, 1]} : vector<1x128xf32> to vector<1x32xf32>
    %90 = arith.mulf %87, %76 : vector<1x32xf32>
    %91 = arith.mulf %86, %88 : vector<1x32xf32>
    %92 = arith.addf %90, %91 : vector<1x32xf32>
    %93 = math.tanh %92 : vector<1x32xf32>
    %94 = arith.mulf %89, %93 : vector<1x32xf32>
    %c0_50 = arith.constant 0 : index
    %c0_51 = arith.constant 0 : index
    %95 = vector.load %arg22[%c0_50, %c0_51] : memref<8x32xf32, #tpu.memory_space<vmem>>, vector<1x32xf32>
    tpu.vector_store %arg22[%c0_50, %c0_51], %94 {strides = array<i32>} : memref<8x32xf32, #tpu.memory_space<vmem>>, vector<1x32xf32>,
    %96 = vector.extract_strided_slice %71 {offsets = [1, 0], sizes = [1, 128], strides = [1, 1]} : vector<8x128xf32> to vector<1x128xf32>
    %cst_52 = arith.constant dense<0.000000e+00> : vector<1x128xf32>
    %97 = tpu.matmul %94, %72, %cst_52 {dimension_numbers = #tpu.dot_dimension_numbers<[1], [0], [0], [1], [0, 0, 1, 1], [], []>} : vector<1x32xf32>, vector<32x128xf32>, vector<1x128xf32> -> vector<1x128xf32>
    %98 = arith.addf %96, %97 : vector<1x128xf32>
    %99 = arith.negf %98 : vector<1x128xf32>
    %100 = math.exp %99 : vector<1x128xf32>
    %cst_53 = arith.constant 1.000000e+00 : f32
    %101 = vector.broadcast %cst_53 : f32 to vector<1x128xf32>
    %102 = arith.addf %101, %100 : vector<1x128xf32>
    %103 = arith.divf %101, %102 : vector<1x128xf32>
    %104 = math.tanh %98 : vector<1x128xf32>
    %105 = vector.extract_strided_slice %103 {offsets = [0, 0], sizes = [1, 32], strides = [1, 1]} : vector<1x128xf32> to vector<1x32xf32>
    %106 = vector.extract_strided_slice %103 {offsets = [0, 32], sizes = [1, 32], strides = [1, 1]} : vector<1x128xf32> to vector<1x32xf32>
    %107 = vector.extract_strided_slice %104 {offsets = [0, 64], sizes = [1, 32], strides = [1, 1]} : vector<1x128xf32> to vector<1x32xf32>
    %108 = vector.extract_strided_slice %103 {offsets = [0, 96], sizes = [1, 32], strides = [1, 1]} : vector<1x128xf32> to vector<1x32xf32>
    %109 = arith.mulf %106, %92 : vector<1x32xf32>
    %110 = arith.mulf %105, %107 : vector<1x32xf32>
    %111 = arith.addf %109, %110 : vector<1x32xf32>
    %112 = math.tanh %111 : vector<1x32xf32>
    %113 = arith.mulf %108, %112 : vector<1x32xf32>
    %c1 = arith.constant 1 : index
    %c0_54 = arith.constant 0 : index
    %114 = vector.load %arg22[%c1, %c0_54] : memref<8x32xf32, #tpu.memory_space<vmem>>, vector<1x32xf32>
    tpu.vector_store %arg22[%c1, %c0_54], %113 {strides = array<i32>} : memref<8x32xf32, #tpu.memory_space<vmem>>, vector<1x32xf32>,
    %115 = vector.extract_strided_slice %71 {offsets = [2, 0], sizes = [1, 128], strides = [1, 1]} : vector<8x128xf32> to vector<1x128xf32>
    %cst_55 = arith.constant dense<0.000000e+00> : vector<1x128xf32>
    %116 = tpu.matmul %113, %72, %cst_55 {dimension_numbers = #tpu.dot_dimension_numbers<[1], [0], [0], [1], [0, 0, 1, 1], [], []>} : vector<1x32xf32>, vector<32x128xf32>, vector<1x128xf32> -> vector<1x128xf32>
    %117 = arith.addf %115, %116 : vector<1x128xf32>
    %118 = arith.negf %117 : vector<1x128xf32>
    %119 = math.exp %118 : vector<1x128xf32>
    %cst_56 = arith.constant 1.000000e+00 : f32
    %120 = vector.broadcast %cst_56 : f32 to vector<1x128xf32>
    %121 = arith.addf %120, %119 : vector<1x128xf32>
    %122 = arith.divf %120, %121 : vector<1x128xf32>
    %123 = math.tanh %117 : vector<1x128xf32>
    %124 = vector.extract_strided_slice %122 {offsets = [0, 0], sizes = [1, 32], strides = [1, 1]} : vector<1x128xf32> to vector<1x32xf32>
    %125 = vector.extract_strided_slice %122 {offsets = [0, 32], sizes = [1, 32], strides = [1, 1]} : vector<1x128xf32> to vector<1x32xf32>
    %126 = vector.extract_strided_slice %123 {offsets = [0, 64], sizes = [1, 32], strides = [1, 1]} : vector<1x128xf32> to vector<1x32xf32>
    %127 = vector.extract_strided_slice %122 {offsets = [0, 96], sizes = [1, 32], strides = [1, 1]} : vector<1x128xf32> to vector<1x32xf32>
    %128 = arith.mulf %125, %111 : vector<1x32xf32>
    %129 = arith.mulf %124, %126 : vector<1x32xf32>
    %130 = arith.addf %128, %129 : vector<1x32xf32>
    %131 = math.tanh %130 : vector<1x32xf32>
    %132 = arith.mulf %127, %131 : vector<1x32xf32>
    %c2 = arith.constant 2 : index
    %c0_57 = arith.constant 0 : index
    %133 = vector.load %arg22[%c2, %c0_57] : memref<8x32xf32, #tpu.memory_space<vmem>>, vector<1x32xf32>
    tpu.vector_store %arg22[%c2, %c0_57], %132 {strides = array<i32>} : memref<8x32xf32, #tpu.memory_space<vmem>>, vector<1x32xf32>,
    %134 = vector.extract_strided_slice %71 {offsets = [3, 0], sizes = [1, 128], strides = [1, 1]} : vector<8x128xf32> to vector<1x128xf32>
    %cst_58 = arith.constant dense<0.000000e+00> : vector<1x128xf32>
    %135 = tpu.matmul %132, %72, %cst_58 {dimension_numbers = #tpu.dot_dimension_numbers<[1], [0], [0], [1], [0, 0, 1, 1], [], []>} : vector<1x32xf32>, vector<32x128xf32>, vector<1x128xf32> -> vector<1x128xf32>
    %136 = arith.addf %134, %135 : vector<1x128xf32>
    %137 = arith.negf %136 : vector<1x128xf32>
    %138 = math.exp %137 : vector<1x128xf32>
    %cst_59 = arith.constant 1.000000e+00 : f32
    %139 = vector.broadcast %cst_59 : f32 to vector<1x128xf32>
    %140 = arith.addf %139, %138 : vector<1x128xf32>
    %141 = arith.divf %139, %140 : vector<1x128xf32>
    %142 = math.tanh %136 : vector<1x128xf32>
    %143 = vector.extract_strided_slice %141 {offsets = [0, 0], sizes = [1, 32], strides = [1, 1]} : vector<1x128xf32> to vector<1x32xf32>
    %144 = vector.extract_strided_slice %141 {offsets = [0, 32], sizes = [1, 32], strides = [1, 1]} : vector<1x128xf32> to vector<1x32xf32>
    %145 = vector.extract_strided_slice %142 {offsets = [0, 64], sizes = [1, 32], strides = [1, 1]} : vector<1x128xf32> to vector<1x32xf32>
    %146 = vector.extract_strided_slice %141 {offsets = [0, 96], sizes = [1, 32], strides = [1, 1]} : vector<1x128xf32> to vector<1x32xf32>
    %147 = arith.mulf %144, %130 : vector<1x32xf32>
    %148 = arith.mulf %143, %145 : vector<1x32xf32>
    %149 = arith.addf %147, %148 : vector<1x32xf32>
    %150 = math.tanh %149 : vector<1x32xf32>
    %151 = arith.mulf %146, %150 : vector<1x32xf32>
    %c3 = arith.constant 3 : index
    %c0_60 = arith.constant 0 : index
    %152 = vector.load %arg22[%c3, %c0_60] : memref<8x32xf32, #tpu.memory_space<vmem>>, vector<1x32xf32>
    tpu.vector_store %arg22[%c3, %c0_60], %151 {strides = array<i32>} : memref<8x32xf32, #tpu.memory_space<vmem>>, vector<1x32xf32>,
    %153 = vector.extract_strided_slice %71 {offsets = [4, 0], sizes = [1, 128], strides = [1, 1]} : vector<8x128xf32> to vector<1x128xf32>
    %cst_61 = arith.constant dense<0.000000e+00> : vector<1x128xf32>
    %154 = tpu.matmul %151, %72, %cst_61 {dimension_numbers = #tpu.dot_dimension_numbers<[1], [0], [0], [1], [0, 0, 1, 1], [], []>} : vector<1x32xf32>, vector<32x128xf32>, vector<1x128xf32> -> vector<1x128xf32>
    %155 = arith.addf %153, %154 : vector<1x128xf32>
    %156 = arith.negf %155 : vector<1x128xf32>
    %157 = math.exp %156 : vector<1x128xf32>
    %cst_62 = arith.constant 1.000000e+00 : f32
    %158 = vector.broadcast %cst_62 : f32 to vector<1x128xf32>
    %159 = arith.addf %158, %157 : vector<1x128xf32>
    %160 = arith.divf %158, %159 : vector<1x128xf32>
    %161 = math.tanh %155 : vector<1x128xf32>
    %162 = vector.extract_strided_slice %160 {offsets = [0, 0], sizes = [1, 32], strides = [1, 1]} : vector<1x128xf32> to vector<1x32xf32>
    %163 = vector.extract_strided_slice %160 {offsets = [0, 32], sizes = [1, 32], strides = [1, 1]} : vector<1x128xf32> to vector<1x32xf32>
    %164 = vector.extract_strided_slice %161 {offsets = [0, 64], sizes = [1, 32], strides = [1, 1]} : vector<1x128xf32> to vector<1x32xf32>
    %165 = vector.extract_strided_slice %160 {offsets = [0, 96], sizes = [1, 32], strides = [1, 1]} : vector<1x128xf32> to vector<1x32xf32>
    %166 = arith.mulf %163, %149 : vector<1x32xf32>
    %167 = arith.mulf %162, %164 : vector<1x32xf32>
    %168 = arith.addf %166, %167 : vector<1x32xf32>
    %169 = math.tanh %168 : vector<1x32xf32>
    %170 = arith.mulf %165, %169 : vector<1x32xf32>
    %c4 = arith.constant 4 : index
    %c0_63 = arith.constant 0 : index
    %171 = vector.load %arg22[%c4, %c0_63] : memref<8x32xf32, #tpu.memory_space<vmem>>, vector<1x32xf32>
    tpu.vector_store %arg22[%c4, %c0_63], %170 {strides = array<i32>} : memref<8x32xf32, #tpu.memory_space<vmem>>, vector<1x32xf32>,
    %172 = vector.extract_strided_slice %71 {offsets = [5, 0], sizes = [1, 128], strides = [1, 1]} : vector<8x128xf32> to vector<1x128xf32>
    %cst_64 = arith.constant dense<0.000000e+00> : vector<1x128xf32>
    %173 = tpu.matmul %170, %72, %cst_64 {dimension_numbers = #tpu.dot_dimension_numbers<[1], [0], [0], [1], [0, 0, 1, 1], [], []>} : vector<1x32xf32>, vector<32x128xf32>, vector<1x128xf32> -> vector<1x128xf32>
    %174 = arith.addf %172, %173 : vector<1x128xf32>
    %175 = arith.negf %174 : vector<1x128xf32>
    %176 = math.exp %175 : vector<1x128xf32>
    %cst_65 = arith.constant 1.000000e+00 : f32
    %177 = vector.broadcast %cst_65 : f32 to vector<1x128xf32>
    %178 = arith.addf %177, %176 : vector<1x128xf32>
    %179 = arith.divf %177, %178 : vector<1x128xf32>
    %180 = math.tanh %174 : vector<1x128xf32>
    %181 = vector.extract_strided_slice %179 {offsets = [0, 0], sizes = [1, 32], strides = [1, 1]} : vector<1x128xf32> to vector<1x32xf32>
    %182 = vector.extract_strided_slice %179 {offsets = [0, 32], sizes = [1, 32], strides = [1, 1]} : vector<1x128xf32> to vector<1x32xf32>
    %183 = vector.extract_strided_slice %180 {offsets = [0, 64], sizes = [1, 32], strides = [1, 1]} : vector<1x128xf32> to vector<1x32xf32>
    %184 = vector.extract_strided_slice %179 {offsets = [0, 96], sizes = [1, 32], strides = [1, 1]} : vector<1x128xf32> to vector<1x32xf32>
    %185 = arith.mulf %182, %168 : vector<1x32xf32>
    %186 = arith.mulf %181, %183 : vector<1x32xf32>
    %187 = arith.addf %185, %186 : vector<1x32xf32>
    %188 = math.tanh %187 : vector<1x32xf32>
    %189 = arith.mulf %184, %188 : vector<1x32xf32>
    %c5 = arith.constant 5 : index
    %c0_66 = arith.constant 0 : index
    %190 = vector.load %arg22[%c5, %c0_66] : memref<8x32xf32, #tpu.memory_space<vmem>>, vector<1x32xf32>
    tpu.vector_store %arg22[%c5, %c0_66], %189 {strides = array<i32>} : memref<8x32xf32, #tpu.memory_space<vmem>>, vector<1x32xf32>,
    %191 = vector.extract_strided_slice %71 {offsets = [6, 0], sizes = [1, 128], strides = [1, 1]} : vector<8x128xf32> to vector<1x128xf32>
    %cst_67 = arith.constant dense<0.000000e+00> : vector<1x128xf32>
    %192 = tpu.matmul %189, %72, %cst_67 {dimension_numbers = #tpu.dot_dimension_numbers<[1], [0], [0], [1], [0, 0, 1, 1], [], []>} : vector<1x32xf32>, vector<32x128xf32>, vector<1x128xf32> -> vector<1x128xf32>
    %193 = arith.addf %191, %192 : vector<1x128xf32>
    %194 = arith.negf %193 : vector<1x128xf32>
    %195 = math.exp %194 : vector<1x128xf32>
    %cst_68 = arith.constant 1.000000e+00 : f32
    %196 = vector.broadcast %cst_68 : f32 to vector<1x128xf32>
    %197 = arith.addf %196, %195 : vector<1x128xf32>
    %198 = arith.divf %196, %197 : vector<1x128xf32>
    %199 = math.tanh %193 : vector<1x128xf32>
    %200 = vector.extract_strided_slice %198 {offsets = [0, 0], sizes = [1, 32], strides = [1, 1]} : vector<1x128xf32> to vector<1x32xf32>
    %201 = vector.extract_strided_slice %198 {offsets = [0, 32], sizes = [1, 32], strides = [1, 1]} : vector<1x128xf32> to vector<1x32xf32>
    %202 = vector.extract_strided_slice %199 {offsets = [0, 64], sizes = [1, 32], strides = [1, 1]} : vector<1x128xf32> to vector<1x32xf32>
    %203 = vector.extract_strided_slice %198 {offsets = [0, 96], sizes = [1, 32], strides = [1, 1]} : vector<1x128xf32> to vector<1x32xf32>
    %204 = arith.mulf %201, %187 : vector<1x32xf32>
    %205 = arith.mulf %200, %202 : vector<1x32xf32>
    %206 = arith.addf %204, %205 : vector<1x32xf32>
    %207 = math.tanh %206 : vector<1x32xf32>
    %208 = arith.mulf %203, %207 : vector<1x32xf32>
    %c6 = arith.constant 6 : index
    %c0_69 = arith.constant 0 : index
    %209 = vector.load %arg22[%c6, %c0_69] : memref<8x32xf32, #tpu.memory_space<vmem>>, vector<1x32xf32>
    tpu.vector_store %arg22[%c6, %c0_69], %208 {strides = array<i32>} : memref<8x32xf32, #tpu.memory_space<vmem>>, vector<1x32xf32>,
    %210 = vector.extract_strided_slice %71 {offsets = [7, 0], sizes = [1, 128], strides = [1, 1]} : vector<8x128xf32> to vector<1x128xf32>
    %cst_70 = arith.constant dense<0.000000e+00> : vector<1x128xf32>
    %211 = tpu.matmul %208, %72, %cst_70 {dimension_numbers = #tpu.dot_dimension_numbers<[1], [0], [0], [1], [0, 0, 1, 1], [], []>} : vector<1x32xf32>, vector<32x128xf32>, vector<1x128xf32> -> vector<1x128xf32>
    %212 = arith.addf %210, %211 : vector<1x128xf32>
    %213 = arith.negf %212 : vector<1x128xf32>
    %214 = math.exp %213 : vector<1x128xf32>
    %cst_71 = arith.constant 1.000000e+00 : f32
    %215 = vector.broadcast %cst_71 : f32 to vector<1x128xf32>
    %216 = arith.addf %215, %214 : vector<1x128xf32>
    %217 = arith.divf %215, %216 : vector<1x128xf32>
    %218 = math.tanh %212 : vector<1x128xf32>
    %219 = vector.extract_strided_slice %217 {offsets = [0, 0], sizes = [1, 32], strides = [1, 1]} : vector<1x128xf32> to vector<1x32xf32>
    %220 = vector.extract_strided_slice %217 {offsets = [0, 32], sizes = [1, 32], strides = [1, 1]} : vector<1x128xf32> to vector<1x32xf32>
    %221 = vector.extract_strided_slice %218 {offsets = [0, 64], sizes = [1, 32], strides = [1, 1]} : vector<1x128xf32> to vector<1x32xf32>
    %222 = vector.extract_strided_slice %217 {offsets = [0, 96], sizes = [1, 32], strides = [1, 1]} : vector<1x128xf32> to vector<1x32xf32>
    %223 = arith.mulf %220, %206 : vector<1x32xf32>
    %224 = arith.mulf %219, %221 : vector<1x32xf32>
    %225 = arith.addf %223, %224 : vector<1x32xf32>
    %226 = math.tanh %225 : vector<1x32xf32>
    %227 = arith.mulf %222, %226 : vector<1x32xf32>
    %c7 = arith.constant 7 : index
    %c0_72 = arith.constant 0 : index
    %228 = vector.load %arg22[%c7, %c0_72] : memref<8x32xf32, #tpu.memory_space<vmem>>, vector<1x32xf32>
    tpu.vector_store %arg22[%c7, %c0_72], %227 {strides = array<i32>} : memref<8x32xf32, #tpu.memory_space<vmem>>, vector<1x32xf32>,
    %c0_73 = arith.constant 0 : index
    %c0_74 = arith.constant 0 : index
    %c0_75 = arith.constant 0 : index
    %229 = vector.load %arg20[%c0_73, %c0_74, %c0_75] : memref<1x1x32xf32, #tpu.memory_space<vmem>>, vector<1x1x32xf32>
    %230 = vector.shape_cast %229 : vector<1x1x32xf32> to vector<1x32xf32>
    %231 = vector.shape_cast %227 : vector<1x32xf32> to vector<1x1x32xf32>
    tpu.vector_store %arg20[%c0_73, %c0_74, %c0_75], %231 {strides = array<i32>} : memref<1x1x32xf32, #tpu.memory_space<vmem>>, vector<1x1x32xf32>,
    %c0_76 = arith.constant 0 : index
    %c0_77 = arith.constant 0 : index
    %c0_78 = arith.constant 0 : index
    %232 = vector.load %arg21[%c0_76, %c0_77, %c0_78] : memref<1x1x32xf32, #tpu.memory_space<vmem>>, vector<1x1x32xf32>
    %233 = vector.shape_cast %232 : vector<1x1x32xf32> to vector<1x32xf32>
    %234 = vector.shape_cast %225 : vector<1x32xf32> to vector<1x1x32xf32>
    tpu.vector_store %arg21[%c0_76, %c0_77, %c0_78], %234 {strides = array<i32>} : memref<1x1x32xf32, #tpu.memory_space<vmem>>, vector<1x1x32xf32>,
    %c0_79 = arith.constant 0 : index
    %c0_80 = arith.constant 0 : index
    %235 = vector.load %arg22[%c0_79, %c0_80] : memref<8x32xf32, #tpu.memory_space<vmem>>, vector<8x32xf32>
    %c0_81 = arith.constant 0 : index
    %c0_82 = arith.constant 0 : index
    %236 = vector.load %arg17[%c0_81, %c0_82] : memref<32x128xf32, #tpu.memory_space<vmem>>, vector<32x128xf32>
    %cst_83 = arith.constant dense<0.000000e+00> : vector<8x128xf32>
    %237 = tpu.matmul %235, %236, %cst_83 {dimension_numbers = #tpu.dot_dimension_numbers<[1], [0], [0], [1], [0, 0, 1, 1], [], []>} : vector<8x32xf32>, vector<32x128xf32>, vector<8x128xf32> -> vector<8x128xf32>
    %c0_84 = arith.constant 0 : index
    %c0_85 = arith.constant 0 : index
    %238 = vector.load %arg18[%c0_84, %c0_85] : memref<1x128xf32, #tpu.memory_space<vmem>>, vector<1x128xf32>
    %239 = vector.broadcast %238 : vector<1x128xf32> to vector<8x128xf32>
    %240 = arith.addf %237, %239 : vector<8x128xf32>
    %c0_86 = arith.constant 0 : index
    %c0_87 = arith.constant 0 : index
    %c0_88 = arith.constant 0 : index
    %241 = vector.load %arg19[%c0_86, %c0_87, %c0_88] : memref<1x8x128xf32, #tpu.memory_space<vmem>>, vector<1x8x128xf32>
    %242 = vector.shape_cast %241 : vector<1x8x128xf32> to vector<8x128xf32>
    %243 = vector.shape_cast %240 : vector<8x128xf32> to vector<1x8x128xf32>
    tpu.vector_store %arg19[%c0_86, %c0_87, %c0_88], %243 {strides = array<i32>} : memref<1x8x128xf32, #tpu.memory_space<vmem>>, vector<1x8x128xf32>,
    return
  }
  func.func @transform_0(%arg0: i32) -> (i32, i32, i32) {
    %c0_i32 = arith.constant 0 : i32
    %c0_i32_0 = arith.constant 0 : i32
    %c0_i32_1 = arith.constant 0 : i32
    return %arg0, %c0_i32, %c0_i32_0 : i32, i32, i32
  }
  func.func @transform_1(%arg0: i32) -> (i32, i32, i32) {
    %c0_i32 = arith.constant 0 : i32
    %c0_i32_0 = arith.constant 0 : i32
    %c0_i32_1 = arith.constant 0 : i32
    return %arg0, %c0_i32, %c0_i32_0 : i32, i32, i32
  }
  func.func @transform_2(%arg0: i32) -> (i32, i32, i32) {
    %c0_i32 = arith.constant 0 : i32
    %c0_i32_0 = arith.constant 0 : i32
    %c0_i32_1 = arith.constant 0 : i32
    return %arg0, %c0_i32, %c0_i32_0 : i32, i32, i32
  }
  func.func @transform_3(%arg0: i32) -> (i32, i32, i32) {
    %c0_i32 = arith.constant 0 : i32
    %c0_i32_0 = arith.constant 0 : i32
    %c0_i32_1 = arith.constant 0 : i32
    return %arg0, %c0_i32, %c0_i32_0 : i32, i32, i32
  }
  func.func @transform_4(%arg0: i32) -> (i32, i32) {
    %c0_i32 = arith.constant 0 : i32
    %c0_i32_0 = arith.constant 0 : i32
    %c0_i32_1 = arith.constant 0 : i32
    return %c0_i32, %c0_i32_0 : i32, i32
  }
  func.func @transform_5(%arg0: i32) -> (i32, i32) {
    %c0_i32 = arith.constant 0 : i32
    %c0_i32_0 = arith.constant 0 : i32
    %c0_i32_1 = arith.constant 0 : i32
    return %c0_i32, %c0_i32_0 : i32, i32
  }
  func.func @transform_6(%arg0: i32) -> (i32, i32) {
    %c0_i32 = arith.constant 0 : i32
    %c0_i32_0 = arith.constant 0 : i32
    %c0_i32_1 = arith.constant 0 : i32
    return %c0_i32, %c0_i32_0 : i32, i32
  }
  func.func @transform_7(%arg0: i32) -> (i32, i32) {
    %c0_i32 = arith.constant 0 : i32
    %c0_i32_0 = arith.constant 0 : i32
    %c0_i32_1 = arith.constant 0 : i32
    return %c0_i32, %c0_i32_0 : i32, i32
  }
  func.func @transform_8(%arg0: i32) -> (i32, i32) {
    %c0_i32 = arith.constant 0 : i32
    %c0_i32_0 = arith.constant 0 : i32
    %c0_i32_1 = arith.constant 0 : i32
    return %c0_i32, %c0_i32_0 : i32, i32
  }
  func.func @transform_9(%arg0: i32) -> (i32, i32) {
    %c0_i32 = arith.constant 0 : i32
    %c0_i32_0 = arith.constant 0 : i32
    %c0_i32_1 = arith.constant 0 : i32
    return %c0_i32, %c0_i32_0 : i32, i32
  }
  func.func @transform_10(%arg0: i32) -> (i32, i32) {
    %c0_i32 = arith.constant 0 : i32
    %c0_i32_0 = arith.constant 0 : i32
    %c0_i32_1 = arith.constant 0 : i32
    return %c0_i32, %c0_i32_0 : i32, i32
  }
  func.func @transform_11(%arg0: i32) -> (i32, i32) {
    %c0_i32 = arith.constant 0 : i32
    %c0_i32_0 = arith.constant 0 : i32
    %c0_i32_1 = arith.constant 0 : i32
    return %c0_i32, %c0_i32_0 : i32, i32
  }
  func.func @transform_12(%arg0: i32) -> (i32, i32) {
    %c0_i32 = arith.constant 0 : i32
    %c0_i32_0 = arith.constant 0 : i32
    %c0_i32_1 = arith.constant 0 : i32
    return %c0_i32, %c0_i32_0 : i32, i32
  }
  func.func @transform_13(%arg0: i32) -> (i32, i32) {
    %c0_i32 = arith.constant 0 : i32
    %c0_i32_0 = arith.constant 0 : i32
    %c0_i32_1 = arith.constant 0 : i32
    return %c0_i32, %c0_i32_0 : i32, i32
  }
  func.func @transform_14(%arg0: i32) -> (i32, i32) {
    %c0_i32 = arith.constant 0 : i32
    %c0_i32_0 = arith.constant 0 : i32
    %c0_i32_1 = arith.constant 0 : i32
    return %c0_i32, %c0_i32_0 : i32, i32
  }
  func.func @transform_15(%arg0: i32) -> (i32, i32) {
    %c0_i32 = arith.constant 0 : i32
    %c0_i32_0 = arith.constant 0 : i32
    %c0_i32_1 = arith.constant 0 : i32
    return %c0_i32, %c0_i32_0 : i32, i32
  }
  func.func @transform_16(%arg0: i32) -> (i32, i32) {
    %c0_i32 = arith.constant 0 : i32
    %c0_i32_0 = arith.constant 0 : i32
    %c0_i32_1 = arith.constant 0 : i32
    return %c0_i32, %c0_i32_0 : i32, i32
  }
  func.func @transform_17(%arg0: i32) -> (i32, i32) {
    %c0_i32 = arith.constant 0 : i32
    %c0_i32_0 = arith.constant 0 : i32
    %c0_i32_1 = arith.constant 0 : i32
    return %c0_i32, %c0_i32_0 : i32, i32
  }
  func.func @transform_18(%arg0: i32) -> (i32, i32, i32) {
    %c0_i32 = arith.constant 0 : i32
    %c0_i32_0 = arith.constant 0 : i32
    %c0_i32_1 = arith.constant 0 : i32
    return %arg0, %c0_i32, %c0_i32_0 : i32, i32, i32
  }
  func.func @transform_19(%arg0: i32) -> (i32, i32, i32) {
    %c0_i32 = arith.constant 0 : i32
    %c0_i32_0 = arith.constant 0 : i32
    %c0_i32_1 = arith.constant 0 : i32
    return %arg0, %c0_i32, %c0_i32_0 : i32, i32, i32
  }
  func.func @transform_20(%arg0: i32) -> (i32, i32, i32) {
    %c0_i32 = arith.constant 0 : i32
    %c0_i32_0 = arith.constant 0 : i32
    %c0_i32_1 = arith.constant 0 : i32
    return %arg0, %c0_i32, %c0_i32_0 : i32, i32, i32
  }
}

</mosaic_0001>

<llo_original>
// kernel: model_forward.1
$region0: #{model_forward.1}
  #allocation0 [shape = 'u32[]', space=smem, size = 0x4, offset = 0x4, fixed_abs, tag = 'smem constant byte address 0x4 - core index']
  #allocation1 [shape = 'u32[72,128]{1,0:T(1,128)}', space=vmem, size = 0x9000, scoped, tag = 'internal scratch']
  #allocation2 [shape = 'f32[8,32]{1,0:T(8,128)}', space=vmem, size = 0x1000, scoped, tag = 'scratch operand']
  %s0 = inlined_call_operand.vmem [shape: f32[2,8,8], index: 0, kind: input, shape index: {}]
  %s1 = inlined_call_operand.vmem [shape: f32[2,8,5], index: 1, kind: input, shape index: {}]
  %s2 = inlined_call_operand.vmem [shape: f32[2,1,32], index: 2, kind: input, shape index: {}]
  %s3 = inlined_call_operand.vmem [shape: f32[2,1,32], index: 3, kind: input, shape index: {}]
  %s4 = inlined_call_operand.vmem [shape: f32[8,32], index: 4, kind: input, shape index: {}]
  %s5 = inlined_call_operand.vmem [shape: f32[1,32], index: 5, kind: input, shape index: {}]
  %s6 = inlined_call_operand.vmem [shape: f32[1,32], index: 6, kind: input, shape index: {}]
  %s7 = inlined_call_operand.vmem [shape: f32[1,32], index: 7, kind: input, shape index: {}]
  %s8 = inlined_call_operand.vmem [shape: f32[32,32], index: 8, kind: input, shape index: {}]
  %s9 = inlined_call_operand.vmem [shape: f32[1,32], index: 9, kind: input, shape index: {}]
  %s10 = inlined_call_operand.vmem [shape: f32[1,32], index: 10, kind: input, shape index: {}]
  %s11 = inlined_call_operand.vmem [shape: f32[1,32], index: 11, kind: input, shape index: {}]
  %s12 = inlined_call_operand.vmem [shape: f32[32,128], index: 12, kind: input, shape index: {}]
  %s13 = inlined_call_operand.vmem [shape: f32[5,128], index: 13, kind: input, shape index: {}]
  %s14 = inlined_call_operand.vmem [shape: f32[32,128], index: 14, kind: input, shape index: {}]
  %s15 = inlined_call_operand.vmem [shape: f32[1,128], index: 15, kind: input, shape index: {}]
  %s16 = inlined_call_operand.vmem [shape: f32[32,128], index: 16, kind: input, shape index: {}]
  %s17 = inlined_call_operand.vmem [shape: f32[1,128], index: 17, kind: input, shape index: {}]
  %s18 = inlined_call_operand.vmem [shape: f32[2,8,128], index: 18, kind: output, shape index: {0}]
  %s19 = inlined_call_operand.hbm [shape: f32[2,1,32], index: 19, kind: output, shape index: {1}]
  %s20 = inlined_call_operand.hbm [shape: f32[2,1,32], index: 20, kind: output, shape index: {2}]
  %21 = xla_tuple %s18, %s19, %s20
  %s22 = sld [smem:[#allocation0]]
  $region121: #{model_forward.1} parent=0
    _
  %s24 = ssub.s32 1, %s22
  %s25 = scalar_select 0, %s24, %s22
  $region1: #{model_forward.1} parent=0
    #allocation3 [shape = 'u8[1024]{0}', space=vmem, size = 0x400, scoped, tag = 'output window, operand 1']
    #allocation4 [shape = 's32[2]{0}', space=sflag, size = 0x8, scoped, tag = 'scoped memory for model_forward.1']
    #allocation5 [shape = 'u8[1024]{0}', space=vmem, size = 0x400, scoped, tag = 'output window, operand 2']
    #allocation6 [shape = 's32[2]{0}', space=sflag, size = 0x8, scoped, tag = 'scoped memory for model_forward.1']
    %26 = vsyncpa [#allocation4], 0
    %s27 = scalar_lea.sflag [#allocation4], 1
    %28 = vsyncpa %s27, 0
    %29 = vsyncpa [#allocation6], 0
    %s30 = scalar_lea.sflag [#allocation6], 1
    %31 = vsyncpa %s30, 0
    loop: start=0, step=1, limit=4
    $region2: #{model_forward.1} parent=1 // loop_pre_header
      _
    $region3: #{model_forward.1} parent=1 // loop_header
      %s33 = sphi 0, %s37
      %p34 = scmp.ge.s32.totalorder %s33, 4
      %s43 = sphi 0, %s45
      %s46 = sphi 0, %s43
      %s47 = sphi 0, %s46
      %s63 = sphi 0, %s47
      %s69 = sphi 0, %s71
      %s72 = sphi 0, %s69
      %s73 = sphi 0, %s72
      %s89 = sphi 0, %s73
      %s95 = sphi 0, %s97
      %s98 = sphi 0, %s95
      %s99 = sphi 0, %s98
      %s115 = sphi 0, %s99
      %s121 = sphi 0, %s123
      %s124 = sphi 0, %s121
      %s125 = sphi 0, %s124
      %s141 = sphi 0, %s125
      %s145 = sphi 0, %s145
      %s147 = sphi 0, %s145
      %s148 = sphi 0, %s147
      %s162 = sphi 0, %s148
      %s166 = sphi 0, %s166
      %s168 = sphi 0, %s166
      %s169 = sphi 0, %s168
      %s183 = sphi 0, %s169
      %s187 = sphi 0, %s187
      %s189 = sphi 0, %s187
      %s190 = sphi 0, %s189
      %s204 = sphi 0, %s190
      %s208 = sphi 0, %s208
      %s210 = sphi 0, %s208
      %s211 = sphi 0, %s210
      %s225 = sphi 0, %s211
      %s229 = sphi 0, %s229
      %s231 = sphi 0, %s229
      %s232 = sphi 0, %s231
      %s246 = sphi 0, %s232
      %s250 = sphi 0, %s250
      %s252 = sphi 0, %s250
      %s253 = sphi 0, %s252
      %s267 = sphi 0, %s253
      %s271 = sphi 0, %s271
      %s273 = sphi 0, %s271
      %s274 = sphi 0, %s273
      %s288 = sphi 0, %s274
      %s292 = sphi 0, %s292
      %s294 = sphi 0, %s292
      %s295 = sphi 0, %s294
      %s309 = sphi 0, %s295
      %s313 = sphi 0, %s313
      %s315 = sphi 0, %s313
      %s316 = sphi 0, %s315
      %s330 = sphi 0, %s316
      %s334 = sphi 0, %s334
      %s336 = sphi 0, %s334
      %s337 = sphi 0, %s336
      %s351 = sphi 0, %s337
      %s355 = sphi 0, %s355
      %s357 = sphi 0, %s355
      %s358 = sphi 0, %s357
      %s372 = sphi 0, %s358
      %s376 = sphi 0, %s376
      %s378 = sphi 0, %s376
      %s379 = sphi 0, %s378
      %s393 = sphi 0, %s379
      %s397 = sphi 0, %s397
      %s399 = sphi 0, %s397
      %s400 = sphi 0, %s399
      %s414 = sphi 0, %s400
      %s418 = sphi 0, %s418
      %s420 = sphi 0, %s418
      %s421 = sphi 0, %s420
      %s435 = sphi 0, %s421
      %s441 = sphi 0, %s443
      %s444 = sphi 0, %s441
      %s445 = sphi 0, %s444
      %s461 = sphi 0, %s445
      %s467 = sphi 0, %s469
      %s470 = sphi 0, %s467
      %s471 = sphi 0, %s470
      %s487 = sphi 0, %s471
      %s493 = sphi 0, %s495
      %s496 = sphi 0, %s493
      %s497 = sphi 0, %s496
      %s513 = sphi 0, %s497
    $region4: #{model_forward.1} parent=1 // loop_header_branch
      %36 = sbr.rel (%p34) target = $region8
    $region5: #{model_forward.1} parent=1 // loop_body
      %s38 = ssub.s32 %s33, 1
      %s39 = ssub.s32 %s33, 2
      %s40 = sadd.s32 %s33, 1
      %s41 = ssub.s32 %s33, %s40
      %p42 = scmp.eq.s32.totalorder %s41, 0
      %s44 = sadd.s32 %s43, 1
      %s45 = scalar_select %p42, %s43, %s44
      %p48 = pneg %p42
      %p49 = scmp.eq.s32.totalorder %s33, 1
      %p50 = por %p48, %p49
      %p51 = scmp.ne.s32.totalorder %s43, %s46
      %p52 = scmp.eq.s32.totalorder %s33, 0
      %p53 = por %p51, %p52
      %p54 = scmp.ne.s32.totalorder %s43, %s46
      %p55 = scmp.eq.s32.totalorder %s38, 1
      %p56 = por %p54, %p55
      %p57 = scmp.ne.s32.totalorder %s46, %s47
      %p58 = scmp.eq.s32.totalorder %s38, 0
      %p59 = por %p57, %p58
      %p60 = scmp.ne.s32.totalorder %s46, %s47
      %p61 = scmp.eq.s32.totalorder %s39, 1
      %p62 = por %p60, %p61
      %p64 = scmp.ne.s32.totalorder %s47, %s63
      %p65 = scmp.eq.s32.totalorder %s39, 0
      %p66 = por %p64, %p65
      %s67 = ssub.s32 %s33, %s40
      %p68 = scmp.eq.s32.totalorder %s67, 0
      %s70 = sadd.s32 %s69, 1
      %s71 = scalar_select %p68, %s69, %s70
      %p74 = pneg %p68
      %p75 = scmp.eq.s32.totalorder %s33, 1
      %p76 = por %p74, %p75
      %p77 = scmp.ne.s32.totalorder %s69, %s72
      %p78 = scmp.eq.s32.totalorder %s33, 0
      %p79 = por %p77, %p78
      %p80 = scmp.ne.s32.totalorder %s69, %s72
      %p81 = scmp.eq.s32.totalorder %s38, 1
      %p82 = por %p80, %p81
      %p83 = scmp.ne.s32.totalorder %s72, %s73
      %p84 = scmp.eq.s32.totalorder %s38, 0
      %p85 = por %p83, %p84
      %p86 = scmp.ne.s32.totalorder %s72, %s73
      %p87 = scmp.eq.s32.totalorder %s39, 1
      %p88 = por %p86, %p87
      %p90 = scmp.ne.s32.totalorder %s73, %s89
      %p91 = scmp.eq.s32.totalorder %s39, 0
      %p92 = por %p90, %p91
      %s93 = ssub.s32 %s33, %s40
      %p94 = scmp.eq.s32.totalorder %s93, 0
      %s96 = sadd.s32 %s95, 1
      %s97 = scalar_select %p94, %s95, %s96
      %p100 = pneg %p94
      %p101 = scmp.eq.s32.totalorder %s33, 1
      %p102 = por %p100, %p101
      %p103 = scmp.ne.s32.totalorder %s95, %s98
      %p104 = scmp.eq.s32.totalorder %s33, 0
      %p105 = por %p103, %p104
      %p106 = scmp.ne.s32.totalorder %s95, %s98
      %p107 = scmp.eq.s32.totalorder %s38, 1
      %p108 = por %p106, %p107
      %p109 = scmp.ne.s32.totalorder %s98, %s99
      %p110 = scmp.eq.s32.totalorder %s38, 0
      %p111 = por %p109, %p110
      %p112 = scmp.ne.s32.totalorder %s98, %s99
      %p113 = scmp.eq.s32.totalorder %s39, 1
      %p114 = por %p112, %p113
      %p116 = scmp.ne.s32.totalorder %s99, %s115
      %p117 = scmp.eq.s32.totalorder %s39, 0
      %p118 = por %p116, %p117
      %s119 = ssub.s32 %s33, %s40
      %p120 = scmp.eq.s32.totalorder %s119, 0
      %s122 = sadd.s32 %s121, 1
      %s123 = scalar_select %p120, %s121, %s122
      %p126 = pneg %p120
      %p127 = scmp.eq.s32.totalorder %s33, 1
      %p128 = por %p126, %p127
      %p129 = scmp.ne.s32.totalorder %s121, %s124
      %p130 = scmp.eq.s32.totalorder %s33, 0
      %p131 = por %p129, %p130
      %p132 = scmp.ne.s32.totalorder %s121, %s124
      %p133 = scmp.eq.s32.totalorder %s38, 1
      %p134 = por %p132, %p133
      %p135 = scmp.ne.s32.totalorder %s124, %s125
      %p136 = scmp.eq.s32.totalorder %s38, 0
      %p137 = por %p135, %p136
      %p138 = scmp.ne.s32.totalorder %s124, %s125
      %p139 = scmp.eq.s32.totalorder %s39, 1
      %p140 = por %p138, %p139
      %p142 = scmp.ne.s32.totalorder %s125, %s141
      %p143 = scmp.eq.s32.totalorder %s39, 0
      %p144 = por %p142, %p143
      %s146 = sadd.s32 %s145, 1
      %p149 = scmp.eq.s32.totalorder %s33, 1
      %p150 = scmp.ne.s32.totalorder %s145, %s147
      %p151 = scmp.eq.s32.totalorder %s33, 0
      %p152 = por %p150, %p151
      %p153 = scmp.ne.s32.totalorder %s145, %s147
      %p154 = scmp.eq.s32.totalorder %s38, 1
      %p155 = por %p153, %p154
      %p156 = scmp.ne.s32.totalorder %s147, %s148
      %p157 = scmp.eq.s32.totalorder %s38, 0
      %p158 = por %p156, %p157
      %p159 = scmp.ne.s32.totalorder %s147, %s148
      %p160 = scmp.eq.s32.totalorder %s39, 1
      %p161 = por %p159, %p160
      %p163 = scmp.ne.s32.totalorder %s148, %s162
      %p164 = scmp.eq.s32.totalorder %s39, 0
      %p165 = por %p163, %p164
      %s167 = sadd.s32 %s166, 1
      %p170 = scmp.eq.s32.totalorder %s33, 1
      %p171 = scmp.ne.s32.totalorder %s166, %s168
      %p172 = scmp.eq.s32.totalorder %s33, 0
      %p173 = por %p171, %p172
      %p174 = scmp.ne.s32.totalorder %s166, %s168
      %p175 = scmp.eq.s32.totalorder %s38, 1
      %p176 = por %p174, %p175
      %p177 = scmp.ne.s32.totalorder %s168, %s169
      %p178 = scmp.eq.s32.totalorder %s38, 0
      %p179 = por %p177, %p178
      %p180 = scmp.ne.s32.totalorder %s168, %s169
      %p181 = scmp.eq.s32.totalorder %s39, 1
      %p182 = por %p180, %p181
      %p184 = scmp.ne.s32.totalorder %s169, %s183
      %p185 = scmp.eq.s32.totalorder %s39, 0
      %p186 = por %p184, %p185
      %s188 = sadd.s32 %s187, 1
      %p191 = scmp.eq.s32.totalorder %s33, 1
      %p192 = scmp.ne.s32.totalorder %s187, %s189
      %p193 = scmp.eq.s32.totalorder %s33, 0
      %p194 = por %p192, %p193
      %p195 = scmp.ne.s32.totalorder %s187, %s189
      %p196 = scmp.eq.s32.totalorder %s38, 1
      %p197 = por %p195, %p196
      %p198 = scmp.ne.s32.totalorder %s189, %s190
      %p199 = scmp.eq.s32.totalorder %s38, 0
      %p200 = por %p198, %p199
      %p201 = scmp.ne.s32.totalorder %s189, %s190
      %p202 = scmp.eq.s32.totalorder %s39, 1
      %p203 = por %p201, %p202
      %p205 = scmp.ne.s32.totalorder %s190, %s204
      %p206 = scmp.eq.s32.totalorder %s39, 0
      %p207 = por %p205, %p206
      %s209 = sadd.s32 %s208, 1
      %p212 = scmp.eq.s32.totalorder %s33, 1
      %p213 = scmp.ne.s32.totalorder %s208, %s210
      %p214 = scmp.eq.s32.totalorder %s33, 0
      %p215 = por %p213, %p214
      %p216 = scmp.ne.s32.totalorder %s208, %s210
      %p217 = scmp.eq.s32.totalorder %s38, 1
      %p218 = por %p216, %p217
      %p219 = scmp.ne.s32.totalorder %s210, %s211
      %p220 = scmp.eq.s32.totalorder %s38, 0
      %p221 = por %p219, %p220
      %p222 = scmp.ne.s32.totalorder %s210, %s211
      %p223 = scmp.eq.s32.totalorder %s39, 1
      %p224 = por %p222, %p223
      %p226 = scmp.ne.s32.totalorder %s211, %s225
      %p227 = scmp.eq.s32.totalorder %s39, 0
      %p228 = por %p226, %p227
      %s230 = sadd.s32 %s229, 1
      %p233 = scmp.eq.s32.totalorder %s33, 1
      %p234 = scmp.ne.s32.totalorder %s229, %s231
      %p235 = scmp.eq.s32.totalorder %s33, 0
      %p236 = por %p234, %p235
      %p237 = scmp.ne.s32.totalorder %s229, %s231
      %p238 = scmp.eq.s32.totalorder %s38, 1
      %p239 = por %p237, %p238
      %p240 = scmp.ne.s32.totalorder %s231, %s232
      %p241 = scmp.eq.s32.totalorder %s38, 0
      %p242 = por %p240, %p241
      %p243 = scmp.ne.s32.totalorder %s231, %s232
      %p244 = scmp.eq.s32.totalorder %s39, 1
      %p245 = por %p243, %p244
      %p247 = scmp.ne.s32.totalorder %s232, %s246
      %p248 = scmp.eq.s32.totalorder %s39, 0
      %p249 = por %p247, %p248
      %s251 = sadd.s32 %s250, 1
      %p254 = scmp.eq.s32.totalorder %s33, 1
      %p255 = scmp.ne.s32.totalorder %s250, %s252
      %p256 = scmp.eq.s32.totalorder %s33, 0
      %p257 = por %p255, %p256
      %p258 = scmp.ne.s32.totalorder %s250, %s252
      %p259 = scmp.eq.s32.totalorder %s38, 1
      %p260 = por %p258, %p259
      %p261 = scmp.ne.s32.totalorder %s252, %s253
      %p262 = scmp.eq.s32.totalorder %s38, 0
      %p263 = por %p261, %p262
      %p264 = scmp.ne.s32.totalorder %s252, %s253
      %p265 = scmp.eq.s32.totalorder %s39, 1
      %p266 = por %p264, %p265
      %p268 = scmp.ne.s32.totalorder %s253, %s267
      %p269 = scmp.eq.s32.totalorder %s39, 0
      %p270 = por %p268, %p269
      %s272 = sadd.s32 %s271, 1
      %p275 = scmp.eq.s32.totalorder %s33, 1
      %p276 = scmp.ne.s32.totalorder %s271, %s273
      %p277 = scmp.eq.s32.totalorder %s33, 0
      %p278 = por %p276, %p277
      %p279 = scmp.ne.s32.totalorder %s271, %s273
      %p280 = scmp.eq.s32.totalorder %s38, 1
      %p281 = por %p279, %p280
      %p282 = scmp.ne.s32.totalorder %s273, %s274
      %p283 = scmp.eq.s32.totalorder %s38, 0
      %p284 = por %p282, %p283
      %p285 = scmp.ne.s32.totalorder %s273, %s274
      %p286 = scmp.eq.s32.totalorder %s39, 1
      %p287 = por %p285, %p286
      %p289 = scmp.ne.s32.totalorder %s274, %s288
      %p290 = scmp.eq.s32.totalorder %s39, 0
      %p291 = por %p289, %p290
      %s293 = sadd.s32 %s292, 1
      %p296 = scmp.eq.s32.totalorder %s33, 1
      %p297 = scmp.ne.s32.totalorder %s292, %s294
      %p298 = scmp.eq.s32.totalorder %s33, 0
      %p299 = por %p297, %p298
      %p300 = scmp.ne.s32.totalorder %s292, %s294
      %p301 = scmp.eq.s32.totalorder %s38, 1
      %p302 = por %p300, %p301
      %p303 = scmp.ne.s32.totalorder %s294, %s295
      %p304 = scmp.eq.s32.totalorder %s38, 0
      %p305 = por %p303, %p304
      %p306 = scmp.ne.s32.totalorder %s294, %s295
      %p307 = scmp.eq.s32.totalorder %s39, 1
      %p308 = por %p306, %p307
      %p310 = scmp.ne.s32.totalorder %s295, %s309
      %p311 = scmp.eq.s32.totalorder %s39, 0
      %p312 = por %p310, %p311
      %s314 = sadd.s32 %s313, 1
      %p317 = scmp.eq.s32.totalorder %s33, 1
      %p318 = scmp.ne.s32.totalorder %s313, %s315
      %p319 = scmp.eq.s32.totalorder %s33, 0
      %p320 = por %p318, %p319
      %p321 = scmp.ne.s32.totalorder %s313, %s315
      %p322 = scmp.eq.s32.totalorder %s38, 1
      %p323 = por %p321, %p322
      %p324 = scmp.ne.s32.totalorder %s315, %s316
      %p325 = scmp.eq.s32.totalorder %s38, 0
      %p326 = por %p324, %p325
      %p327 = scmp.ne.s32.totalorder %s315, %s316
      %p328 = scmp.eq.s32.totalorder %s39, 1
      %p329 = por %p327, %p328
      %p331 = scmp.ne.s32.totalorder %s316, %s330
      %p332 = scmp.eq.s32.totalorder %s39, 0
      %p333 = por %p331, %p332
      %s335 = sadd.s32 %s334, 1
      %p338 = scmp.eq.s32.totalorder %s33, 1
      %p339 = scmp.ne.s32.totalorder %s334, %s336
      %p340 = scmp.eq.s32.totalorder %s33, 0
      %p341 = por %p339, %p340
      %p342 = scmp.ne.s32.totalorder %s334, %s336
      %p343 = scmp.eq.s32.totalorder %s38, 1
      %p344 = por %p342, %p343
      %p345 = scmp.ne.s32.totalorder %s336, %s337
      %p346 = scmp.eq.s32.totalorder %s38, 0
      %p347 = por %p345, %p346
      %p348 = scmp.ne.s32.totalorder %s336, %s337
      %p349 = scmp.eq.s32.totalorder %s39, 1
      %p350 = por %p348, %p349
      %p352 = scmp.ne.s32.totalorder %s337, %s351
      %p353 = scmp.eq.s32.totalorder %s39, 0
      %p354 = por %p352, %p353
      %s356 = sadd.s32 %s355, 1
      %p359 = scmp.eq.s32.totalorder %s33, 1
      %p360 = scmp.ne.s32.totalorder %s355, %s357
      %p361 = scmp.eq.s32.totalorder %s33, 0
      %p362 = por %p360, %p361
      %p363 = scmp.ne.s32.totalorder %s355, %s357
      %p364 = scmp.eq.s32.totalorder %s38, 1
      %p365 = por %p363, %p364
      %p366 = scmp.ne.s32.totalorder %s357, %s358
      %p367 = scmp.eq.s32.totalorder %s38, 0
      %p368 = por %p366, %p367
      %p369 = scmp.ne.s32.totalorder %s357, %s358
      %p370 = scmp.eq.s32.totalorder %s39, 1
      %p371 = por %p369, %p370
      %p373 = scmp.ne.s32.totalorder %s358, %s372
      %p374 = scmp.eq.s32.totalorder %s39, 0
      %p375 = por %p373, %p374
      %s377 = sadd.s32 %s376, 1
      %p380 = scmp.eq.s32.totalorder %s33, 1
      %p381 = scmp.ne.s32.totalorder %s376, %s378
      %p382 = scmp.eq.s32.totalorder %s33, 0
      %p383 = por %p381, %p382
      %p384 = scmp.ne.s32.totalorder %s376, %s378
      %p385 = scmp.eq.s32.totalorder %s38, 1
      %p386 = por %p384, %p385
      %p387 = scmp.ne.s32.totalorder %s378, %s379
      %p388 = scmp.eq.s32.totalorder %s38, 0
      %p389 = por %p387, %p388
      %p390 = scmp.ne.s32.totalorder %s378, %s379
      %p391 = scmp.eq.s32.totalorder %s39, 1
      %p392 = por %p390, %p391
      %p394 = scmp.ne.s32.totalorder %s379, %s393
      %p395 = scmp.eq.s32.totalorder %s39, 0
      %p396 = por %p394, %p395
      %s398 = sadd.s32 %s397, 1
      %p401 = scmp.eq.s32.totalorder %s33, 1
      %p402 = scmp.ne.s32.totalorder %s397, %s399
      %p403 = scmp.eq.s32.totalorder %s33, 0
      %p404 = por %p402, %p403
      %p405 = scmp.ne.s32.totalorder %s397, %s399
      %p406 = scmp.eq.s32.totalorder %s38, 1
      %p407 = por %p405, %p406
      %p408 = scmp.ne.s32.totalorder %s399, %s400
      %p409 = scmp.eq.s32.totalorder %s38, 0
      %p410 = por %p408, %p409
      %p411 = scmp.ne.s32.totalorder %s399, %s400
      %p412 = scmp.eq.s32.totalorder %s39, 1
      %p413 = por %p411, %p412
      %p415 = scmp.ne.s32.totalorder %s400, %s414
      %p416 = scmp.eq.s32.totalorder %s39, 0
      %p417 = por %p415, %p416
      %s419 = sadd.s32 %s418, 1
      %p422 = scmp.eq.s32.totalorder %s33, 1
      %p423 = scmp.ne.s32.totalorder %s418, %s420
      %p424 = scmp.eq.s32.totalorder %s33, 0
      %p425 = por %p423, %p424
      %p426 = scmp.ne.s32.totalorder %s418, %s420
      %p427 = scmp.eq.s32.totalorder %s38, 1
      %p428 = por %p426, %p427
      %p429 = scmp.ne.s32.totalorder %s420, %s421
      %p430 = scmp.eq.s32.totalorder %s38, 0
      %p431 = por %p429, %p430
      %p432 = scmp.ne.s32.totalorder %s420, %s421
      %p433 = scmp.eq.s32.totalorder %s39, 1
      %p434 = por %p432, %p433
      %p436 = scmp.ne.s32.totalorder %s421, %s435
      %p437 = scmp.eq.s32.totalorder %s39, 0
      %p438 = por %p436, %p437
      %s439 = ssub.s32 %s33, %s40
      %p440 = scmp.eq.s32.totalorder %s439, 0
      %s442 = sadd.s32 %s441, 1
      %s443 = scalar_select %p440, %s441, %s442
      %p446 = pneg %p440
      %p447 = scmp.eq.s32.totalorder %s33, 1
      %p448 = por %p446, %p447
      %p449 = scmp.ne.s32.totalorder %s441, %s444
      %p450 = scmp.eq.s32.totalorder %s33, 0
      %p451 = por %p449, %p450
      %p452 = scmp.ne.s32.totalorder %s441, %s444
      %p453 = scmp.eq.s32.totalorder %s38, 1
      %p454 = por %p452, %p453
      %p455 = scmp.ne.s32.totalorder %s444, %s445
      %p456 = scmp.eq.s32.totalorder %s38, 0
      %p457 = por %p455, %p456
      %p458 = scmp.ne.s32.totalorder %s444, %s445
      %p459 = scmp.eq.s32.totalorder %s39, 1
      %p460 = por %p458, %p459
      %p462 = scmp.ne.s32.totalorder %s445, %s461
      %p463 = scmp.eq.s32.totalorder %s39, 0
      %p464 = por %p462, %p463
      %s465 = ssub.s32 %s33, %s40
      %p466 = scmp.eq.s32.totalorder %s465, 0
      %s468 = sadd.s32 %s467, 1
      %s469 = scalar_select %p466, %s467, %s468
      %p472 = pneg %p466
      %p473 = scmp.eq.s32.totalorder %s33, 1
      %p474 = por %p472, %p473
      %p475 = scmp.ne.s32.totalorder %s467, %s470
      %p476 = scmp.eq.s32.totalorder %s33, 0
      %p477 = por %p475, %p476
      %p478 = scmp.ne.s32.totalorder %s467, %s470
      %p479 = scmp.eq.s32.totalorder %s38, 1
      %p480 = por %p478, %p479
      %p481 = scmp.ne.s32.totalorder %s470, %s471
      %p482 = scmp.eq.s32.totalorder %s38, 0
      %p483 = por %p481, %p482
      %p484 = scmp.ne.s32.totalorder %s470, %s471
      %p485 = scmp.eq.s32.totalorder %s39, 1
      %p486 = por %p484, %p485
      %p488 = scmp.ne.s32.totalorder %s471, %s487
      %p489 = scmp.eq.s32.totalorder %s39, 0
      %p490 = por %p488, %p489
      %s491 = ssub.s32 %s33, %s40
      %p492 = scmp.eq.s32.totalorder %s491, 0
      %s494 = sadd.s32 %s493, 1
      %s495 = scalar_select %p492, %s493, %s494
      %p498 = pneg %p492
      %p499 = scmp.eq.s32.totalorder %s33, 1
      %p500 = por %p498, %p499
      %p501 = scmp.ne.s32.totalorder %s493, %s496
      %p502 = scmp.eq.s32.totalorder %s33, 0
      %p503 = por %p501, %p502
      %p504 = scmp.ne.s32.totalorder %s493, %s496
      %p505 = scmp.eq.s32.totalorder %s38, 1
      %p506 = por %p504, %p505
      %p507 = scmp.ne.s32.totalorder %s496, %s497
      %p508 = scmp.eq.s32.totalorder %s38, 0
      %p509 = por %p507, %p508
      %p510 = scmp.ne.s32.totalorder %s496, %s497
      %p511 = scmp.eq.s32.totalorder %s39, 1
      %p512 = por %p510, %p511
      %p514 = scmp.ne.s32.totalorder %s497, %s513
      %p515 = scmp.eq.s32.totalorder %s39, 0
      %p516 = por %p514, %p515
      %p517 = scmp.le.s32.totalorder 1, %s33
      %p518 = scmp.lt.s32.totalorder %s33, 3
      %p519 = pnand %p517, %p518
      %p520 = pneg %p519
      // Predicated region
      $region9: #{model_forward.1} parent=5 // pred_check
        _
      $region10: #{model_forward.1} parent=5 // pred_check_branch
        %522 = sbr.rel (%p519) target = $region12
      $region11: #{model_forward.1} parent=5 // pred_region
        %s523 = ssub.s32 %s33, 1
        // Predicated region
        $region13: #{model_forward.1} parent=11 // pred_check
          %p524 = pneg %p158
        $region14: #{model_forward.1} parent=11 // pred_check_branch
          %526 = sbr.rel (%p524) target = $region16
        $region15: #{model_forward.1} parent=11 // pred_region
          _
        $region16: #{model_forward.1} parent=11 // pred_fallthru
          _
        // Predicated region
        $region17: #{model_forward.1} parent=11 // pred_check
          %p527 = pneg %p179
        $region18: #{model_forward.1} parent=11 // pred_check_branch
          %529 = sbr.rel (%p527) target = $region20
        $region19: #{model_forward.1} parent=11 // pred_region
          _
        $region20: #{model_forward.1} parent=11 // pred_fallthru
          _
        // Predicated region
        $region21: #{model_forward.1} parent=11 // pred_check
          %p530 = pneg %p200
        $region22: #{model_forward.1} parent=11 // pred_check_branch
          %532 = sbr.rel (%p530) target = $region24
        $region23: #{model_forward.1} parent=11 // pred_region
          _
        $region24: #{model_forward.1} parent=11 // pred_fallthru
          _
        // Predicated region
        $region25: #{model_forward.1} parent=11 // pred_check
          %p533 = pneg %p221
        $region26: #{model_forward.1} parent=11 // pred_check_branch
          %535 = sbr.rel (%p533) target = $region28
        $region27: #{model_forward.1} parent=11 // pred_region
          _
        $region28: #{model_forward.1} parent=11 // pred_fallthru
          _
        // Predicated region
        $region29: #{model_forward.1} parent=11 // pred_check
          %p536 = pneg %p242
        $region30: #{model_forward.1} parent=11 // pred_check_branch
          %538 = sbr.rel (%p536) target = $region32
        $region31: #{model_forward.1} parent=11 // pred_region
          _
        $region32: #{model_forward.1} parent=11 // pred_fallthru
          _
        // Predicated region
        $region33: #{model_forward.1} parent=11 // pred_check
          %p539 = pneg %p263
        $region34: #{model_forward.1} parent=11 // pred_check_branch
          %541 = sbr.rel (%p539) target = $region36
        $region35: #{model_forward.1} parent=11 // pred_region
          _
        $region36: #{model_forward.1} parent=11 // pred_fallthru
          _
        // Predicated region
        $region37: #{model_forward.1} parent=11 // pred_check
          %p542 = pneg %p284
        $region38: #{model_forward.1} parent=11 // pred_check_branch
          %544 = sbr.rel (%p542) target = $region40
        $region39: #{model_forward.1} parent=11 // pred_region
          _
        $region40: #{model_forward.1} parent=11 // pred_fallthru
          _
        // Predicated region
        $region41: #{model_forward.1} parent=11 // pred_check
          %p545 = pneg %p305
        $region42: #{model_forward.1} parent=11 // pred_check_branch
          %547 = sbr.rel (%p545) target = $region44
        $region43: #{model_forward.1} parent=11 // pred_region
          _
        $region44: #{model_forward.1} parent=11 // pred_fallthru
          _
        // Predicated region
        $region45: #{model_forward.1} parent=11 // pred_check
          %p548 = pneg %p326
        $region46: #{model_forward.1} parent=11 // pred_check_branch
          %550 = sbr.rel (%p548) target = $region48
        $region47: #{model_forward.1} parent=11 // pred_region
          _
        $region48: #{model_forward.1} parent=11 // pred_fallthru
          _
        // Predicated region
        $region49: #{model_forward.1} parent=11 // pred_check
          %p551 = pneg %p347
        $region50: #{model_forward.1} parent=11 // pred_check_branch
          %553 = sbr.rel (%p551) target = $region52
        $region51: #{model_forward.1} parent=11 // pred_region
          _
        $region52: #{model_forward.1} parent=11 // pred_fallthru
          _
        // Predicated region
        $region53: #{model_forward.1} parent=11 // pred_check
          %p554 = pneg %p368
        $region54: #{model_forward.1} parent=11 // pred_check_branch
          %556 = sbr.rel (%p554) target = $region56
        $region55: #{model_forward.1} parent=11 // pred_region
          _
        $region56: #{model_forward.1} parent=11 // pred_fallthru
          _
        // Predicated region
        $region57: #{model_forward.1} parent=11 // pred_check
          %p557 = pneg %p389
        $region58: #{model_forward.1} parent=11 // pred_check_branch
          %559 = sbr.rel (%p557) target = $region60
        $region59: #{model_forward.1} parent=11 // pred_region
          _
        $region60: #{model_forward.1} parent=11 // pred_fallthru
          _
        // Predicated region
        $region61: #{model_forward.1} parent=11 // pred_check
          %p560 = pneg %p410
        $region62: #{model_forward.1} parent=11 // pred_check_branch
          %562 = sbr.rel (%p560) target = $region64
        $region63: #{model_forward.1} parent=11 // pred_region
          _
        $region64: #{model_forward.1} parent=11 // pred_fallthru
          _
        // Predicated region
        $region65: #{model_forward.1} parent=11 // pred_check
          %p563 = pneg %p431
        $region66: #{model_forward.1} parent=11 // pred_check_branch
          %565 = sbr.rel (%p563) target = $region68
        $region67: #{model_forward.1} parent=11 // pred_region
          _
        $region68: #{model_forward.1} parent=11 // pred_fallthru
          _
      $region12: #{model_forward.1} parent=5 // pred_fallthru
        _
      %p566 = scmp.lt.s32.totalorder %s33, 2
      // Predicated region
      $region69: #{model_forward.1} parent=5 // pred_check
        %p567 = pneg %p566
      $region70: #{model_forward.1} parent=5 // pred_check_branch
        %569 = sbr.rel (%p567) target = $region72
      $region71: #{model_forward.1} parent=5 // pred_region
        // Predicated region
        $region73: #{model_forward.1} parent=71 // pred_check
          %p570 = pneg %p53
        $region74: #{model_forward.1} parent=71 // pred_check_branch
          %572 = sbr.rel (%p570) target = $region76
        $region75: #{model_forward.1} parent=71 // pred_region
          %p573 = scmp.lt.s32.totalorder %s33, 1
          %s574 = scalar_select %p573, %s33, 1
          %s575 = smul.addr %s574, 8
          %s576 = scalar_lea.vmem %s0, %s575
        $region76: #{model_forward.1} parent=71 // pred_fallthru
          _
        // Predicated region
        $region77: #{model_forward.1} parent=71 // pred_check
          %p577 = pneg %p79
        $region78: #{model_forward.1} parent=71 // pred_check_branch
          %579 = sbr.rel (%p577) target = $region80
        $region79: #{model_forward.1} parent=71 // pred_region
          %p580 = scmp.lt.s32.totalorder %s33, 1
          %s581 = scalar_select %p580, %s33, 1
          %s582 = smul.addr %s581, 8
          %s583 = scalar_lea.vmem %s1, %s582
        $region80: #{model_forward.1} parent=71 // pred_fallthru
          _
        // Predicated region
        $region81: #{model_forward.1} parent=71 // pred_check
          %p584 = pneg %p105
        $region82: #{model_forward.1} parent=71 // pred_check_branch
          %586 = sbr.rel (%p584) target = $region84
        $region83: #{model_forward.1} parent=71 // pred_region
          %p587 = scmp.lt.s32.totalorder %s33, 1
          %s588 = scalar_select %p587, %s33, 1
          %s589 = scalar_lea.vmem %s2, %s588
        $region84: #{model_forward.1} parent=71 // pred_fallthru
          _
        // Predicated region
        $region85: #{model_forward.1} parent=71 // pred_check
          %p590 = pneg %p131
        $region86: #{model_forward.1} parent=71 // pred_check_branch
          %592 = sbr.rel (%p590) target = $region88
        $region87: #{model_forward.1} parent=71 // pred_region
          %p593 = scmp.lt.s32.totalorder %s33, 1
          %s594 = scalar_select %p593, %s33, 1
          %s595 = scalar_lea.vmem %s3, %s594
        $region88: #{model_forward.1} parent=71 // pred_fallthru
          _
      $region72: #{model_forward.1} parent=5 // pred_fallthru
        _
      %p596 = scmp.le.s32.totalorder 1, %s33
      %p597 = scmp.lt.s32.totalorder %s33, 3
      %p598 = pnand %p596, %p597
      %p599 = pneg %p598
      // Predicated region
      $region89: #{model_forward.1} parent=5 // pred_check
        _
      $region90: #{model_forward.1} parent=5 // pred_check_branch
        %601 = sbr.rel (%p598) target = $region92
      $region91: #{model_forward.1} parent=5 // pred_region
        %s602 = ssub.s32 %s33, 1
        %p603 = scmp.lt.s32.totalorder %s38, 1
        %s604 = scalar_select %p603, %s38, 1
        %s605 = smul.addr %s604, 8
        %s606 = scalar_lea.vmem %s0, %s605
        %p607 = pneg %p59
        %p608 = pneg %p56
        %p609 = scmp.lt.s32.totalorder %s38, 1
        %s610 = scalar_select %p609, %s38, 1
        %s611 = smul.addr %s610, 8
        %s612 = scalar_lea.vmem %s1, %s611
        %p613 = pneg %p85
        %p614 = pneg %p82
        %p615 = scmp.lt.s32.totalorder %s38, 1
        %s616 = scalar_select %p615, %s38, 1
        %s617 = scalar_lea.vmem %s2, %s616
        %p618 = pneg %p111
        %p619 = pneg %p108
        %p620 = scmp.lt.s32.totalorder %s38, 1
        %s621 = scalar_select %p620, %s38, 1
        %s622 = scalar_lea.vmem %s3, %s621
        %p623 = pneg %p137
        %p624 = pneg %p134
        %p625 = pneg %p158
        %p626 = pneg %p155
        %p627 = pneg %p179
        %p628 = pneg %p176
        %p629 = pneg %p200
        %p630 = pneg %p197
        %p631 = pneg %p221
        %p632 = pneg %p218
        %p633 = pneg %p242
        %p634 = pneg %p239
        %p635 = pneg %p263
        %p636 = pneg %p260
        %p637 = pneg %p284
        %p638 = pneg %p281
        %p639 = pneg %p305
        %p640 = pneg %p302
        %p641 = pneg %p326
        %p642 = pneg %p323
        %p643 = pneg %p347
        %p644 = pneg %p344
        %p645 = pneg %p368
        %p646 = pneg %p365
        %p647 = pneg %p389
        %p648 = pneg %p386
        %p649 = pneg %p410
        %p650 = pneg %p407
        %p651 = pneg %p431
        %p652 = pneg %p428
        %p653 = pneg %p457
        %p654 = pneg %p454
        %p655 = scmp.lt.s32.totalorder %s38, 1
        %s656 = scalar_select %p655, %s38, 1
        %s657 = smul.addr %s656, 8
        %s658 = scalar_lea.vmem %s18, %s657
        %p659 = pneg %p483
        %p660 = pneg %p480
        %s661 = sand.u32 %s470, 1
        %s662 = scalar_lea.sflag [#allocation4], %s661
        %s663 = sand.u32 %s470, 1
        %s664 = scalar_lea.vmem [#allocation3], %s663
        %p665 = pneg %p509
        %p666 = pneg %p506
        %s667 = sand.u32 %s496, 1
        %s668 = scalar_lea.sflag [#allocation6], %s667
        %s669 = sand.u32 %s496, 1
        %s670 = scalar_lea.vmem [#allocation5], %s669
        %p671 = scmp.lt.s32.totalorder %s38, 1
        %s672 = scalar_select %p671, %s38, 1
        %s673 = smul.addr %s672, 8
        %s674 = scalar_lea.vmem %s0, %s673
        %p675 = scmp.lt.s32.totalorder %s38, 1
        %s676 = scalar_select %p675, %s38, 1
        %s677 = smul.addr %s676, 8
        %s678 = scalar_lea.vmem %s1, %s677
        %p679 = scmp.lt.s32.totalorder %s38, 1
        %s680 = scalar_select %p679, %s38, 1
        %s681 = scalar_lea.vmem %s2, %s680
        %p682 = scmp.lt.s32.totalorder %s38, 1
        %s683 = scalar_select %p682, %s38, 1
        %s684 = scalar_lea.vmem %s3, %s683
        %p685 = scmp.lt.s32.totalorder %s38, 1
        %s686 = scalar_select %p685, %s38, 1
        %s687 = smul.addr %s686, 8
        %s688 = scalar_lea.vmem %s18, %s687
        %v689 = vld [vmem:[%s674] sm:$0xff]
        %v690 = vld [vmem:[%s4] sm:$0xff]
        %v691 = vld [vmem:[%s5] sm:$0x1]
        %v693 = vperm.slane %v691, 0
        %vm695 = vcmask 64512
        %v697 = vsel %vm695, %v689, 0
        %699 = vmatpush.msra.mxu0 0.0
        %700 = vmatpush.msra.mxu0 0.0
        %701 = vmatpush.msra.mxu0 0.0
        %702 = vmatpush.msra.mxu0 0.0
        %703 = vmatpush.msra.mxu0 0.0
        %704 = vmatpush.msra.mxu0 0.0
        %705 = vmatpush.msra.mxu0 0.0
        %706 = vmatpush.msra.mxu0 0.0
        %707 = vmatpush.msra.mxu0 0.0
        %708 = vmatpush.msra.mxu0 0.0
        %709 = vmatpush.msra.mxu0 0.0
        %710 = vmatpush.msra.mxu0 0.0
        %711 = vmatpush.msra.mxu0 0.0
        %712 = vmatpush.msra.mxu0 0.0
        %713 = vmatpush.msra.mxu0 0.0
        %714 = vmatpush.msra.mxu0 %v690
        %715 = vmatmul.f32.gmra.mxu0 %v697
        %v716 = vpop.f32.mrf.mxu0
        %v717 = vadd.f32 %v693, %v716
        %718 = vdwg.mxu0
        %v719 = vtanh.pop %v717
        %vm720 = vcmask 261120
        %v721 = vsel %vm720, %v719, 0.0
        %722 = vadd.xlane.f32.xlu0 %v721
        %v723 = vpop.xlane.xlu0 %722
        %v724 = vrcp.pop 32.0
        %v725 = vmul.f32 32.0, %v724
        %v726 = vsub.f32 1.0, %v725
        %v727 = vmul.f32 %v724, %v726
        %v728 = vadd.f32 %v724, %v727
        %vm729 = vweird.f32 %v724
        %v730 = vsel %vm729, %v724, %v728
        %v731 = vmul.f32 %v723, %v730
        %v732 = vsub.f32 %v719, %v731
        %v733 = vmul.f32 %v732, %v732
        %v734 = vsel %vm720, %v733, 0.0
        %735 = vadd.xlane.f32.xlu0 %v734
        %v736 = vpop.xlane.xlu0 %735
        %v737 = vmul.f32 %v736, %v730
        %v738 = vadd.f32 %v737, 1e-05
        %v739 = vrsqrt.pop %v738
        %v740 = vmul.f32 %v739, %v738
        %v741 = vmul.f32 %v740, %v739
        %v742 = vmul.f32 0.5, %v741
        %v743 = vsub.f32 1.5, %v742
        %v744 = vmul.f32 %v739, %v743
        %vm745 = vweird.f32 %v738
        %vm746 = vweird.f32 %v739
        %vm747 = vmor %vm745, %vm746
        %v748 = vsel %vm747, %v739, %v744
        %v749 = vmul.f32 %v732, %v748
        %v750 = vld [vmem:[%s6] sm:$0x1]
        %v752 = vperm.slane %v750, 0
        %v754 = vmul.f32 %v749, %v752
        %v755 = vld [vmem:[%s7] sm:$0x1]
        %v757 = vperm.slane %v755, 0
        %v759 = vadd.f32 %v754, %v757
        %v760 = vld [vmem:[%s8] sm:$0xff]
        %v761 = vld [vmem:[%s8 + $0x8] sm:$0xff]
        %v762 = vld [vmem:[%s8 + $0x10] sm:$0xff]
        %v763 = vld [vmem:[%s8 + $0x18] sm:$0xff]
        %v764 = vld [vmem:[%s9] sm:$0x1]
        %v766 = vperm.slane %v764, 0
        %v769 = vsel %vm720, %v759, 0
        %771 = vmatpush.msra.mxu0 0.0
        %772 = vmatpush.msra.mxu0 0.0
        %773 = vmatpush.msra.mxu0 0.0
        %774 = vmatpush.msra.mxu0 0.0
        %775 = vmatpush.msra.mxu0 0.0
        %776 = vmatpush.msra.mxu0 0.0
        %777 = vmatpush.msra.mxu0 0.0
        %778 = vmatpush.msra.mxu0 0.0
        %779 = vmatpush.msra.mxu0 0.0
        %780 = vmatpush.msra.mxu0 0.0
        %781 = vmatpush.msra.mxu0 0.0
        %782 = vmatpush.msra.mxu0 0.0
        %783 = vmatpush.msra.mxu0 %v763
        %784 = vmatpush.msra.mxu0 %v762
        %785 = vmatpush.msra.mxu0 %v761
        %786 = vmatpush.msra.mxu0 %v760
        %787 = vmatmul.f32.gmra.mxu0 %v769
        %v788 = vpop.f32.mrf.mxu0
        %v789 = vadd.f32 %v766, %v788
        %790 = vdwg.mxu0
        %v791 = vtanh.pop %v789
        %v792 = vsel %vm720, %v791, 0.0
        %793 = vadd.xlane.f32.xlu0 %v792
        %v794 = vpop.xlane.xlu0 %793
        %v795 = vmul.f32 %v794, %v730
        %v796 = vsub.f32 %v791, %v795
        %v797 = vmul.f32 %v796, %v796
        %v798 = vsel %vm720, %v797, 0.0
        %799 = vadd.xlane.f32.xlu0 %v798
        %v800 = vpop.xlane.xlu0 %799
        %v801 = vmul.f32 %v800, %v730
        %v802 = vadd.f32 %v801, 1e-05
        %v803 = vrsqrt.pop %v802
        %v804 = vmul.f32 %v803, %v802
        %v805 = vmul.f32 %v804, %v803
        %v806 = vmul.f32 0.5, %v805
        %v807 = vsub.f32 1.5, %v806
        %v808 = vmul.f32 %v803, %v807
        %vm809 = vweird.f32 %v802
        %vm810 = vweird.f32 %v803
        %vm811 = vmor %vm809, %vm810
        %v812 = vsel %vm811, %v803, %v808
        %v813 = vmul.f32 %v796, %v812
        %v814 = vld [vmem:[%s10] sm:$0x1]
        %v816 = vperm.slane %v814, 0
        %v818 = vmul.f32 %v813, %v816
        %v819 = vld [vmem:[%s11] sm:$0x1]
        %v821 = vperm.slane %v819, 0
        %v823 = vadd.f32 %v818, %v821
        %v824 = vld [vmem:[%s678] sm:$0xff]
        %v825 = vld [vmem:[%s12] sm:$0xff]
        %v826 = vld [vmem:[%s12 + $0x8] sm:$0xff]
        %v827 = vld [vmem:[%s12 + $0x10] sm:$0xff]
        %v828 = vld [vmem:[%s12 + $0x18] sm:$0xff]
        %v829 = vld [vmem:[%s13] sm:$0x1f]
        %vm830 = vcmask 39936
        %v832 = vsel %vm830, %v824, 0
        %vm834 = vcmask 1044480
        %v836 = vsel %vm834, %v829, 0
        %838 = vmatpush.msra.mxu0 0.0
        %839 = vmatpush.msra.mxu0 0.0
        %840 = vmatpush.msra.mxu0 0.0
        %841 = vmatpush.msra.mxu0 0.0
        %842 = vmatpush.msra.mxu0 0.0
        %843 = vmatpush.msra.mxu0 0.0
        %844 = vmatpush.msra.mxu0 0.0
        %845 = vmatpush.msra.mxu0 0.0
        %846 = vmatpush.msra.mxu0 0.0
        %847 = vmatpush.msra.mxu0 0.0
        %848 = vmatpush.msra.mxu0 0.0
        %849 = vmatpush.msra.mxu0 0.0
        %850 = vmatpush.msra.mxu0 0.0
        %851 = vmatpush.msra.mxu0 0.0
        %852 = vmatpush.msra.mxu0 0.0
        %853 = vmatpush.msra.mxu0 %v836
        %854 = vmatmul.f32.gmra.mxu0 %v832
        %v855 = vpop.f32.mrf.mxu0
        %v856 = vadd.f32 0.0, %v855
        %857 = vdwg.mxu0
        %v859 = vsel %vm720, %v823, 0
        %861 = vmatpush.msra.mxu0 0.0
        %862 = vmatpush.msra.mxu0 0.0
        %863 = vmatpush.msra.mxu0 0.0
        %864 = vmatpush.msra.mxu0 0.0
        %865 = vmatpush.msra.mxu0 0.0
        %866 = vmatpush.msra.mxu0 0.0
        %867 = vmatpush.msra.mxu0 0.0
        %868 = vmatpush.msra.mxu0 0.0
        %869 = vmatpush.msra.mxu0 0.0
        %870 = vmatpush.msra.mxu0 0.0
        %871 = vmatpush.msra.mxu0 0.0
        %872 = vmatpush.msra.mxu0 0.0
        %873 = vmatpush.msra.mxu0 %v828
        %874 = vmatpush.msra.mxu0 %v827
        %875 = vmatpush.msra.mxu0 %v826
        %876 = vmatpush.msra.mxu0 %v825
        %877 = vmatmul.f32.gmra.mxu0 %v859
        %v878 = vpop.f32.mrf.mxu0
        %v879 = vadd.f32 %v856, %v878
        %880 = vdwg.mxu0
        %v881 = vld [vmem:[%s15] sm:$0x1]
        %v883 = vperm.slane %v881, 0
        %v885 = vadd.f32 %v879, %v883
        %v886 = vld [vmem:[%s14] sm:$0xff]
        %v887 = vld [vmem:[%s14 + $0x8] sm:$0xff]
        %v888 = vld [vmem:[%s14 + $0x10] sm:$0xff]
        %v889 = vld [vmem:[%s14 + $0x18] sm:$0xff]
        %v890 = vld [vmem:[%s681] sm:$0x1]
        %v891 = vld [vmem:[%s684] sm:$0x1]
        %v893 = vsel %vm720, %v890, 0
        %895 = vmatpush.msra.mxu0 0.0
        %896 = vmatpush.msra.mxu0 0.0
        %897 = vmatpush.msra.mxu0 0.0
        %898 = vmatpush.msra.mxu0 0.0
        %899 = vmatpush.msra.mxu0 0.0
        %900 = vmatpush.msra.mxu0 0.0
        %901 = vmatpush.msra.mxu0 0.0
        %902 = vmatpush.msra.mxu0 0.0
        %903 = vmatpush.msra.mxu0 0.0
        %904 = vmatpush.msra.mxu0 0.0
        %905 = vmatpush.msra.mxu0 0.0
        %906 = vmatpush.msra.mxu0 0.0
        %907 = vmatpush.msra.mxu0 %v889
        %908 = vmatpush.msra.mxu0 %v888
        %909 = vmatpush.msra.mxu0 %v887
        %910 = vmatpush.msra.mxu0 %v886
        %911 = vmatmul.f32.gmra.mxu0 %v893
        %v912 = vpop.f32.mrf.mxu0
        %v913 = vadd.f32 0.0, %v912
        %914 = vdwg.mxu0
        %v915 = vadd.f32 %v885, %v913
        %v916 = vxor.u32 %v915, 2147483648
        %v917 = vmul.f32 %v916, 1.442695
        %v918 = vpow.pop %v917
        %v919 = vadd.f32 %v918, 1.0
        %v920 = vrcp.pop %v919
        %v921 = vmul.f32 %v919, %v920
        %v922 = vsub.f32 1.0, %v921
        %v923 = vmul.f32 %v920, %v922
        %v924 = vadd.f32 %v920, %v923
        %vm925 = vweird.f32 %v919
        %vm926 = vweird.f32 %v920
        %vm927 = vmor %vm925, %vm926
        %v928 = vsel %vm927, %v920, %v924
        %v929 = vand.u32 2147483647, %v919
        %vm930 = vcmp.eq.f32.partialorder %v929, 8.507059e+37
        %v931 = vand.u32 %v919, 2147483648
        %v932 = vor.u32 1.1754944e-38, %v931
        %v933 = vsel %vm930, %v932, %v928
        %v934 = vmul.f32 1.0, %v933
        %v935 = vtanh.pop %v915
        %v937 = vperm.slane %v891, 0
        %938 = vrot.lane.b32.xlu0 %v937, 32
        %v939 = vpop.permute.xlu0 %938
        %v941 = vmul.f32 %v934, %v939
        %943 = vrot.lane.b32.xlu0 %v935, 64
        %v944 = vpop.permute.xlu0 %943
        %v946 = vmul.f32 %v934, %v944
        %948 = vrot.lane.b32.xlu0 %v946, 32
        %v949 = vpop.permute.xlu0 %948
        %v951 = vadd.f32 %v941, %v949
        %v952 = vtanh.pop %v951
        %954 = vrot.lane.b32.xlu0 %v952, 64
        %v955 = vpop.permute.xlu0 %954
        %v957 = vmul.f32 %v934, %v955
        %959 = vrot.lane.b32.xlu0 %v957, 32
        %v960 = vpop.permute.xlu0 %959
        %vm962 = vcmask 253952
        %963 = vst.msk [vmem:[#allocation2] sm:$0x1] %vm962, %v960
        %v964 = vsel %vm720, %v960, 0
        %966 = vmatpush.msra.mxu0 0.0
        %967 = vmatpush.msra.mxu0 0.0
        %968 = vmatpush.msra.mxu0 0.0
        %969 = vmatpush.msra.mxu0 0.0
        %970 = vmatpush.msra.mxu0 0.0
        %971 = vmatpush.msra.mxu0 0.0
        %972 = vmatpush.msra.mxu0 0.0
        %973 = vmatpush.msra.mxu0 0.0
        %974 = vmatpush.msra.mxu0 0.0
        %975 = vmatpush.msra.mxu0 0.0
        %976 = vmatpush.msra.mxu0 0.0
        %977 = vmatpush.msra.mxu0 0.0
        %978 = vmatpush.msra.mxu0 %v889
        %979 = vmatpush.msra.mxu0 %v888
        %980 = vmatpush.msra.mxu0 %v887
        %981 = vmatpush.msra.mxu0 %v886
        %982 = vmatmul.f32.gmra.mxu0 %v964
        %v983 = vpop.f32.mrf.mxu0
        %v984 = vadd.f32 0.0, %v983
        %985 = vdwg.mxu0
        %v987 = vrot.slane %v984, 7
        %v989 = vadd.f32 %v885, %v987
        %v990 = vxor.u32 %v989, 2147483648
        %v991 = vmul.f32 %v990, 1.442695
        %v992 = vpow.pop %v991
        %v993 = vadd.f32 %v992, 1.0
        %v994 = vrcp.pop %v993
        %v995 = vmul.f32 %v993, %v994
        %v996 = vsub.f32 1.0, %v995
        %v997 = vmul.f32 %v994, %v996
        %v998 = vadd.f32 %v994, %v997
        %vm999 = vweird.f32 %v993
        %vm1000 = vweird.f32 %v994
        %vm1001 = vmor %vm999, %vm1000
        %v1002 = vsel %vm1001, %v994, %v998
        %v1003 = vand.u32 2147483647, %v993
        %vm1004 = vcmp.eq.f32.partialorder %v1003, 8.507059e+37
        %v1005 = vand.u32 %v993, 2147483648
        %v1006 = vor.u32 1.1754944e-38, %v1005
        %v1007 = vsel %vm1004, %v1006, %v1002
        %v1008 = vmul.f32 1.0, %v1007
        %v1009 = vtanh.pop %v989
        %v1011 = vrot.slane %v951, 7
        %v1013 = vmul.f32 %v1008, %v1011
        %1015 = vrot.lane.b32.xlu0 %v1009, 64
        %v1016 = vpop.permute.xlu0 %1015
        %v1018 = vmul.f32 %v1008, %v1016
        %1020 = vrot.lane.b32.xlu0 %v1018, 32
        %v1021 = vpop.permute.xlu0 %1020
        %v1023 = vadd.f32 %v1013, %v1021
        %v1024 = vtanh.pop %v1023
        %1026 = vrot.lane.b32.xlu0 %v1024, 64
        %v1027 = vpop.permute.xlu0 %1026
        %v1029 = vmul.f32 %v1008, %v1027
        %1031 = vrot.lane.b32.xlu0 %v1029, 32
        %v1032 = vpop.permute.xlu0 %1031
        %vm1034 = vcmask 254977
        %1035 = vst.msk [vmem:[#allocation2] sm:$0x2] %vm1034, %v1032
        %v1036 = vrot.slane %v1029, 1
        %1037 = vrot.lane.b32.xlu0 %v1036, 32
        %v1038 = vpop.permute.xlu0 %1037
        %v1039 = vsel %vm720, %v1038, 0
        %1041 = vmatpush.msra.mxu0 0.0
        %1042 = vmatpush.msra.mxu0 0.0
        %1043 = vmatpush.msra.mxu0 0.0
        %1044 = vmatpush.msra.mxu0 0.0
        %1045 = vmatpush.msra.mxu0 0.0
        %1046 = vmatpush.msra.mxu0 0.0
        %1047 = vmatpush.msra.mxu0 0.0
        %1048 = vmatpush.msra.mxu0 0.0
        %1049 = vmatpush.msra.mxu0 0.0
        %1050 = vmatpush.msra.mxu0 0.0
        %1051 = vmatpush.msra.mxu0 0.0
        %1052 = vmatpush.msra.mxu0 0.0
        %1053 = vmatpush.msra.mxu0 %v889
        %1054 = vmatpush.msra.mxu0 %v888
        %1055 = vmatpush.msra.mxu0 %v887
        %1056 = vmatpush.msra.mxu0 %v886
        %1057 = vmatmul.f32.gmra.mxu0 %v1039
        %v1058 = vpop.f32.mrf.mxu0
        %v1059 = vadd.f32 0.0, %v1058
        %1060 = vdwg.mxu0
        %v1062 = vrot.slane %v1059, 6
        %v1064 = vadd.f32 %v885, %v1062
        %v1065 = vxor.u32 %v1064, 2147483648
        %v1066 = vmul.f32 %v1065, 1.442695
        %v1067 = vpow.pop %v1066
        %v1068 = vadd.f32 %v1067, 1.0
        %v1069 = vrcp.pop %v1068
        %v1070 = vmul.f32 %v1068, %v1069
        %v1071 = vsub.f32 1.0, %v1070
        %v1072 = vmul.f32 %v1069, %v1071
        %v1073 = vadd.f32 %v1069, %v1072
        %vm1074 = vweird.f32 %v1068
        %vm1075 = vweird.f32 %v1069
        %vm1076 = vmor %vm1074, %vm1075
        %v1077 = vsel %vm1076, %v1069, %v1073
        %v1078 = vand.u32 2147483647, %v1068
        %vm1079 = vcmp.eq.f32.partialorder %v1078, 8.507059e+37
        %v1080 = vand.u32 %v1068, 2147483648
        %v1081 = vor.u32 1.1754944e-38, %v1080
        %v1082 = vsel %vm1079, %v1081, %v1077
        %v1083 = vmul.f32 1.0, %v1082
        %v1084 = vtanh.pop %v1064
        %v1086 = vrot.slane %v1023, 7
        %v1088 = vmul.f32 %v1083, %v1086
        %1090 = vrot.lane.b32.xlu0 %v1084, 64
        %v1091 = vpop.permute.xlu0 %1090
        %v1093 = vmul.f32 %v1083, %v1091
        %1095 = vrot.lane.b32.xlu0 %v1093, 32
        %v1096 = vpop.permute.xlu0 %1095
        %v1098 = vadd.f32 %v1088, %v1096
        %v1099 = vtanh.pop %v1098
        %1101 = vrot.lane.b32.xlu0 %v1099, 64
        %v1102 = vpop.permute.xlu0 %1101
        %v1104 = vmul.f32 %v1083, %v1102
        %1106 = vrot.lane.b32.xlu0 %v1104, 32
        %v1107 = vpop.permute.xlu0 %1106
        %vm1109 = vcmask 256002
        %1110 = vst.msk [vmem:[#allocation2] sm:$0x4] %vm1109, %v1107
        %v1111 = vrot.slane %v1104, 2
        %1112 = vrot.lane.b32.xlu0 %v1111, 32
        %v1113 = vpop.permute.xlu0 %1112
        %v1114 = vsel %vm720, %v1113, 0
        %1116 = vmatpush.msra.mxu0 0.0
        %1117 = vmatpush.msra.mxu0 0.0
        %1118 = vmatpush.msra.mxu0 0.0
        %1119 = vmatpush.msra.mxu0 0.0
        %1120 = vmatpush.msra.mxu0 0.0
        %1121 = vmatpush.msra.mxu0 0.0
        %1122 = vmatpush.msra.mxu0 0.0
        %1123 = vmatpush.msra.mxu0 0.0
        %1124 = vmatpush.msra.mxu0 0.0
        %1125 = vmatpush.msra.mxu0 0.0
        %1126 = vmatpush.msra.mxu0 0.0
        %1127 = vmatpush.msra.mxu0 0.0
        %1128 = vmatpush.msra.mxu0 %v889
        %1129 = vmatpush.msra.mxu0 %v888
        %1130 = vmatpush.msra.mxu0 %v887
        %1131 = vmatpush.msra.mxu0 %v886
        %1132 = vmatmul.f32.gmra.mxu0 %v1114
        %v1133 = vpop.f32.mrf.mxu0
        %v1134 = vadd.f32 0.0, %v1133
        %1135 = vdwg.mxu0
        %v1137 = vrot.slane %v1134, 5
        %v1139 = vadd.f32 %v885, %v1137
        %v1140 = vxor.u32 %v1139, 2147483648
        %v1141 = vmul.f32 %v1140, 1.442695
        %v1142 = vpow.pop %v1141
        %v1143 = vadd.f32 %v1142, 1.0
        %v1144 = vrcp.pop %v1143
        %v1145 = vmul.f32 %v1143, %v1144
        %v1146 = vsub.f32 1.0, %v1145
        %v1147 = vmul.f32 %v1144, %v1146
        %v1148 = vadd.f32 %v1144, %v1147
        %vm1149 = vweird.f32 %v1143
        %vm1150 = vweird.f32 %v1144
        %vm1151 = vmor %vm1149, %vm1150
        %v1152 = vsel %vm1151, %v1144, %v1148
        %v1153 = vand.u32 2147483647, %v1143
        %vm1154 = vcmp.eq.f32.partialorder %v1153, 8.507059e+37
        %v1155 = vand.u32 %v1143, 2147483648
        %v1156 = vor.u32 1.1754944e-38, %v1155
        %v1157 = vsel %vm1154, %v1156, %v1152
        %v1158 = vmul.f32 1.0, %v1157
        %v1159 = vtanh.pop %v1139
        %v1161 = vrot.slane %v1098, 7
        %v1163 = vmul.f32 %v1158, %v1161
        %1165 = vrot.lane.b32.xlu0 %v1159, 64
        %v1166 = vpop.permute.xlu0 %1165
        %v1168 = vmul.f32 %v1158, %v1166
        %1170 = vrot.lane.b32.xlu0 %v1168, 32
        %v1171 = vpop.permute.xlu0 %1170
        %v1173 = vadd.f32 %v1163, %v1171
        %v1174 = vtanh.pop %v1173
        %1176 = vrot.lane.b32.xlu0 %v1174, 64
        %v1177 = vpop.permute.xlu0 %1176
        %v1179 = vmul.f32 %v1158, %v1177
        %1181 = vrot.lane.b32.xlu0 %v1179, 32
        %v1182 = vpop.permute.xlu0 %1181
        %vm1184 = vcmask 257027
        %1185 = vst.msk [vmem:[#allocation2] sm:$0x8] %vm1184, %v1182
        %v1186 = vrot.slane %v1179, 3
        %1187 = vrot.lane.b32.xlu0 %v1186, 32
        %v1188 = vpop.permute.xlu0 %1187
        %v1189 = vsel %vm720, %v1188, 0
        %1191 = vmatpush.msra.mxu0 0.0
        %1192 = vmatpush.msra.mxu0 0.0
        %1193 = vmatpush.msra.mxu0 0.0
        %1194 = vmatpush.msra.mxu0 0.0
        %1195 = vmatpush.msra.mxu0 0.0
        %1196 = vmatpush.msra.mxu0 0.0
        %1197 = vmatpush.msra.mxu0 0.0
        %1198 = vmatpush.msra.mxu0 0.0
        %1199 = vmatpush.msra.mxu0 0.0
        %1200 = vmatpush.msra.mxu0 0.0
        %1201 = vmatpush.msra.mxu0 0.0
        %1202 = vmatpush.msra.mxu0 0.0
        %1203 = vmatpush.msra.mxu0 %v889
        %1204 = vmatpush.msra.mxu0 %v888
        %1205 = vmatpush.msra.mxu0 %v887
        %1206 = vmatpush.msra.mxu0 %v886
        %1207 = vmatmul.f32.gmra.mxu0 %v1189
        %v1208 = vpop.f32.mrf.mxu0
        %v1209 = vadd.f32 0.0, %v1208
        %1210 = vdwg.mxu0
        %v1212 = vrot.slane %v1209, 4
        %v1214 = vadd.f32 %v885, %v1212
        %v1215 = vxor.u32 %v1214, 2147483648
        %v1216 = vmul.f32 %v1215, 1.442695
        %v1217 = vpow.pop %v1216
        %v1218 = vadd.f32 %v1217, 1.0
        %v1219 = vrcp.pop %v1218
        %v1220 = vmul.f32 %v1218, %v1219
        %v1221 = vsub.f32 1.0, %v1220
        %v1222 = vmul.f32 %v1219, %v1221
        %v1223 = vadd.f32 %v1219, %v1222
        %vm1224 = vweird.f32 %v1218
        %vm1225 = vweird.f32 %v1219
        %vm1226 = vmor %vm1224, %vm1225
        %v1227 = vsel %vm1226, %v1219, %v1223
        %v1228 = vand.u32 2147483647, %v1218
        %vm1229 = vcmp.eq.f32.partialorder %v1228, 8.507059e+37
        %v1230 = vand.u32 %v1218, 2147483648
        %v1231 = vor.u32 1.1754944e-38, %v1230
        %v1232 = vsel %vm1229, %v1231, %v1227
        %v1233 = vmul.f32 1.0, %v1232
        %v1234 = vtanh.pop %v1214
        %v1236 = vrot.slane %v1173, 7
        %v1238 = vmul.f32 %v1233, %v1236
        %1240 = vrot.lane.b32.xlu0 %v1234, 64
        %v1241 = vpop.permute.xlu0 %1240
        %v1243 = vmul.f32 %v1233, %v1241
        %1245 = vrot.lane.b32.xlu0 %v1243, 32
        %v1246 = vpop.permute.xlu0 %1245
        %v1248 = vadd.f32 %v1238, %v1246
        %v1249 = vtanh.pop %v1248
        %1251 = vrot.lane.b32.xlu0 %v1249, 64
        %v1252 = vpop.permute.xlu0 %1251
        %v1254 = vmul.f32 %v1233, %v1252
        %1256 = vrot.lane.b32.xlu0 %v1254, 32
        %v1257 = vpop.permute.xlu0 %1256
        %vm1259 = vcmask 258052
        %1260 = vst.msk [vmem:[#allocation2] sm:$0x10] %vm1259, %v1257
        %v1261 = vrot.slane %v1254, 4
        %1262 = vrot.lane.b32.xlu0 %v1261, 32
        %v1263 = vpop.permute.xlu0 %1262
        %v1264 = vsel %vm720, %v1263, 0
        %1266 = vmatpush.msra.mxu0 0.0
        %1267 = vmatpush.msra.mxu0 0.0
        %1268 = vmatpush.msra.mxu0 0.0
        %1269 = vmatpush.msra.mxu0 0.0
        %1270 = vmatpush.msra.mxu0 0.0
        %1271 = vmatpush.msra.mxu0 0.0
        %1272 = vmatpush.msra.mxu0 0.0
        %1273 = vmatpush.msra.mxu0 0.0
        %1274 = vmatpush.msra.mxu0 0.0
        %1275 = vmatpush.msra.mxu0 0.0
        %1276 = vmatpush.msra.mxu0 0.0
        %1277 = vmatpush.msra.mxu0 0.0
        %1278 = vmatpush.msra.mxu0 %v889
        %1279 = vmatpush.msra.mxu0 %v888
        %1280 = vmatpush.msra.mxu0 %v887
        %1281 = vmatpush.msra.mxu0 %v886
        %1282 = vmatmul.f32.gmra.mxu0 %v1264
        %v1283 = vpop.f32.mrf.mxu0
        %v1284 = vadd.f32 0.0, %v1283
        %1285 = vdwg.mxu0
        %v1287 = vrot.slane %v1284, 3
        %v1289 = vadd.f32 %v885, %v1287
        %v1290 = vxor.u32 %v1289, 2147483648
        %v1291 = vmul.f32 %v1290, 1.442695
        %v1292 = vpow.pop %v1291
        %v1293 = vadd.f32 %v1292, 1.0
        %v1294 = vrcp.pop %v1293
        %v1295 = vmul.f32 %v1293, %v1294
        %v1296 = vsub.f32 1.0, %v1295
        %v1297 = vmul.f32 %v1294, %v1296
        %v1298 = vadd.f32 %v1294, %v1297
        %vm1299 = vweird.f32 %v1293
        %vm1300 = vweird.f32 %v1294
        %vm1301 = vmor %vm1299, %vm1300
        %v1302 = vsel %vm1301, %v1294, %v1298
        %v1303 = vand.u32 2147483647, %v1293
        %vm1304 = vcmp.eq.f32.partialorder %v1303, 8.507059e+37
        %v1305 = vand.u32 %v1293, 2147483648
        %v1306 = vor.u32 1.1754944e-38, %v1305
        %v1307 = vsel %vm1304, %v1306, %v1302
        %v1308 = vmul.f32 1.0, %v1307
        %v1309 = vtanh.pop %v1289
        %v1311 = vrot.slane %v1248, 7
        %v1313 = vmul.f32 %v1308, %v1311
        %1315 = vrot.lane.b32.xlu0 %v1309, 64
        %v1316 = vpop.permute.xlu0 %1315
        %v1318 = vmul.f32 %v1308, %v1316
        %1320 = vrot.lane.b32.xlu0 %v1318, 32
        %v1321 = vpop.permute.xlu0 %1320
        %v1323 = vadd.f32 %v1313, %v1321
        %v1324 = vtanh.pop %v1323
        %1326 = vrot.lane.b32.xlu0 %v1324, 64
        %v1327 = vpop.permute.xlu0 %1326
        %v1329 = vmul.f32 %v1308, %v1327
        %1331 = vrot.lane.b32.xlu0 %v1329, 32
        %v1332 = vpop.permute.xlu0 %1331
        %vm1334 = vcmask 259077
        %1335 = vst.msk [vmem:[#allocation2] sm:$0x20] %vm1334, %v1332
        %v1336 = vrot.slane %v1329, 5
        %1337 = vrot.lane.b32.xlu0 %v1336, 32
        %v1338 = vpop.permute.xlu0 %1337
        %v1339 = vsel %vm720, %v1338, 0
        %1341 = vmatpush.msra.mxu0 0.0
        %1342 = vmatpush.msra.mxu0 0.0
        %1343 = vmatpush.msra.mxu0 0.0
        %1344 = vmatpush.msra.mxu0 0.0
        %1345 = vmatpush.msra.mxu0 0.0
        %1346 = vmatpush.msra.mxu0 0.0
        %1347 = vmatpush.msra.mxu0 0.0
        %1348 = vmatpush.msra.mxu0 0.0
        %1349 = vmatpush.msra.mxu0 0.0
        %1350 = vmatpush.msra.mxu0 0.0
        %1351 = vmatpush.msra.mxu0 0.0
        %1352 = vmatpush.msra.mxu0 0.0
        %1353 = vmatpush.msra.mxu0 %v889
        %1354 = vmatpush.msra.mxu0 %v888
        %1355 = vmatpush.msra.mxu0 %v887
        %1356 = vmatpush.msra.mxu0 %v886
        %1357 = vmatmul.f32.gmra.mxu0 %v1339
        %v1358 = vpop.f32.mrf.mxu0
        %v1359 = vadd.f32 0.0, %v1358
        %1360 = vdwg.mxu0
        %v1362 = vrot.slane %v1359, 2
        %v1364 = vadd.f32 %v885, %v1362
        %v1365 = vxor.u32 %v1364, 2147483648
        %v1366 = vmul.f32 %v1365, 1.442695
        %v1367 = vpow.pop %v1366
        %v1368 = vadd.f32 %v1367, 1.0
        %v1369 = vrcp.pop %v1368
        %v1370 = vmul.f32 %v1368, %v1369
        %v1371 = vsub.f32 1.0, %v1370
        %v1372 = vmul.f32 %v1369, %v1371
        %v1373 = vadd.f32 %v1369, %v1372
        %vm1374 = vweird.f32 %v1368
        %vm1375 = vweird.f32 %v1369
        %vm1376 = vmor %vm1374, %vm1375
        %v1377 = vsel %vm1376, %v1369, %v1373
        %v1378 = vand.u32 2147483647, %v1368
        %vm1379 = vcmp.eq.f32.partialorder %v1378, 8.507059e+37
        %v1380 = vand.u32 %v1368, 2147483648
        %v1381 = vor.u32 1.1754944e-38, %v1380
        %v1382 = vsel %vm1379, %v1381, %v1377
        %v1383 = vmul.f32 1.0, %v1382
        %v1384 = vtanh.pop %v1364
        %v1386 = vrot.slane %v1323, 7
        %v1388 = vmul.f32 %v1383, %v1386
        %1390 = vrot.lane.b32.xlu0 %v1384, 64
        %v1391 = vpop.permute.xlu0 %1390
        %v1393 = vmul.f32 %v1383, %v1391
        %1395 = vrot.lane.b32.xlu0 %v1393, 32
        %v1396 = vpop.permute.xlu0 %1395
        %v1398 = vadd.f32 %v1388, %v1396
        %v1399 = vtanh.pop %v1398
        %1401 = vrot.lane.b32.xlu0 %v1399, 64
        %v1402 = vpop.permute.xlu0 %1401
        %v1404 = vmul.f32 %v1383, %v1402
        %1406 = vrot.lane.b32.xlu0 %v1404, 32
        %v1407 = vpop.permute.xlu0 %1406
        %vm1409 = vcmask 260102
        %1410 = vst.msk [vmem:[#allocation2] sm:$0x40] %vm1409, %v1407
        %v1411 = vrot.slane %v1404, 6
        %1412 = vrot.lane.b32.xlu0 %v1411, 32
        %v1413 = vpop.permute.xlu0 %1412
        %v1414 = vsel %vm720, %v1413, 0
        %1416 = vmatpush.msra.mxu0 0.0
        %1417 = vmatpush.msra.mxu0 0.0
        %1418 = vmatpush.msra.mxu0 0.0
        %1419 = vmatpush.msra.mxu0 0.0
        %1420 = vmatpush.msra.mxu0 0.0
        %1421 = vmatpush.msra.mxu0 0.0
        %1422 = vmatpush.msra.mxu0 0.0
        %1423 = vmatpush.msra.mxu0 0.0
        %1424 = vmatpush.msra.mxu0 0.0
        %1425 = vmatpush.msra.mxu0 0.0
        %1426 = vmatpush.msra.mxu0 0.0
        %1427 = vmatpush.msra.mxu0 0.0
        %1428 = vmatpush.msra.mxu0 %v889
        %1429 = vmatpush.msra.mxu0 %v888
        %1430 = vmatpush.msra.mxu0 %v887
        %1431 = vmatpush.msra.mxu0 %v886
        %1432 = vmatmul.f32.gmra.mxu0 %v1414
        %v1433 = vpop.f32.mrf.mxu0
        %v1434 = vadd.f32 0.0, %v1433
        %1435 = vdwg.mxu0
        %v1437 = vrot.slane %v1434, 1
        %v1439 = vadd.f32 %v885, %v1437
        %v1440 = vxor.u32 %v1439, 2147483648
        %v1441 = vmul.f32 %v1440, 1.442695
        %v1442 = vpow.pop %v1441
        %v1443 = vadd.f32 %v1442, 1.0
        %v1444 = vrcp.pop %v1443
        %v1445 = vmul.f32 %v1443, %v1444
        %v1446 = vsub.f32 1.0, %v1445
        %v1447 = vmul.f32 %v1444, %v1446
        %v1448 = vadd.f32 %v1444, %v1447
        %vm1449 = vweird.f32 %v1443
        %vm1450 = vweird.f32 %v1444
        %vm1451 = vmor %vm1449, %vm1450
        %v1452 = vsel %vm1451, %v1444, %v1448
        %v1453 = vand.u32 2147483647, %v1443
        %vm1454 = vcmp.eq.f32.partialorder %v1453, 8.507059e+37
        %v1455 = vand.u32 %v1443, 2147483648
        %v1456 = vor.u32 1.1754944e-38, %v1455
        %v1457 = vsel %vm1454, %v1456, %v1452
        %v1458 = vmul.f32 1.0, %v1457
        %v1459 = vtanh.pop %v1439
        %v1461 = vrot.slane %v1398, 7
        %v1463 = vmul.f32 %v1458, %v1461
        %1465 = vrot.lane.b32.xlu0 %v1459, 64
        %v1466 = vpop.permute.xlu0 %1465
        %v1468 = vmul.f32 %v1458, %v1466
        %1470 = vrot.lane.b32.xlu0 %v1468, 32
        %v1471 = vpop.permute.xlu0 %1470
        %v1473 = vadd.f32 %v1463, %v1471
        %v1474 = vtanh.pop %v1473
        %1476 = vrot.lane.b32.xlu0 %v1474, 64
        %v1477 = vpop.permute.xlu0 %1476
        %v1479 = vmul.f32 %v1458, %v1477
        %1481 = vrot.lane.b32.xlu0 %v1479, 32
        %v1482 = vpop.permute.xlu0 %1481
        %vm1484 = vcmask 261127
        %1485 = vst.msk [vmem:[#allocation2] sm:$0x80] %vm1484, %v1482
        %1486 = vst.msk [vmem:[%s664 - $0x7] sm:$0x80] %vm1484, %v1482
        %1488 = vrot.lane.b32.xlu0 %v1473, 96
        %v1489 = vpop.permute.xlu0 %1488
        %1491 = vst.msk [vmem:[%s670 - $0x7] sm:$0x80] %vm1484, %v1489
        %v1492 = vld [vmem:[#allocation2] sm:$0xff]
        %v1493 = vld [vmem:[%s16] sm:$0xff]
        %v1494 = vld [vmem:[%s16 + $0x8] sm:$0xff]
        %v1495 = vld [vmem:[%s16 + $0x10] sm:$0xff]
        %v1496 = vld [vmem:[%s16 + $0x18] sm:$0xff]
        %v1497 = vld [vmem:[%s17] sm:$0x1]
        %v1499 = vperm.slane %v1497, 0
        %v1502 = vsel %vm720, %v1492, 0
        %1504 = vmatpush.msra.mxu0 0.0
        %1505 = vmatpush.msra.mxu0 0.0
        %1506 = vmatpush.msra.mxu0 0.0
        %1507 = vmatpush.msra.mxu0 0.0
        %1508 = vmatpush.msra.mxu0 0.0
        %1509 = vmatpush.msra.mxu0 0.0
        %1510 = vmatpush.msra.mxu0 0.0
        %1511 = vmatpush.msra.mxu0 0.0
        %1512 = vmatpush.msra.mxu0 0.0
        %1513 = vmatpush.msra.mxu0 0.0
        %1514 = vmatpush.msra.mxu0 0.0
        %1515 = vmatpush.msra.mxu0 0.0
        %1516 = vmatpush.msra.mxu0 %v1496
        %1517 = vmatpush.msra.mxu0 %v1495
        %1518 = vmatpush.msra.mxu0 %v1494
        %1519 = vmatpush.msra.mxu0 %v1493
        %1520 = vmatmul.f32.gmra.mxu0 %v1502
        %v1521 = vpop.f32.mrf.mxu0
        %v1522 = vadd.f32 %v1499, %v1521
        %1523 = vdwg.mxu0
        %1524 = vst [vmem:[%s688] sm:$0xff] %v1522
        %p1525 = scmp.lt.s32.totalorder %s38, 1
        %s1526 = scalar_select %p1525, %s38, 1
        %s1527 = smul.addr %s1526, 8
        %s1528 = scalar_lea.vmem %s18, %s1527
        %s1529 = sand.u32 %s470, 1
        %s1530 = scalar_lea.sflag [#allocation4], %s1529
        %s1531 = sand.u32 %s470, 1
        %s1532 = scalar_lea.vmem [#allocation3], %s1531
        %s1533 = sand.u32 %s496, 1
        %s1534 = scalar_lea.sflag [#allocation6], %s1533
        %s1535 = sand.u32 %s496, 1
        %s1536 = scalar_lea.vmem [#allocation5], %s1535
        // Predicated region
        $region93: #{model_forward.1} parent=91 // pred_check
          %p1537 = pneg %p454
        $region94: #{model_forward.1} parent=91 // pred_check_branch
          %1539 = sbr.rel (%p1537) target = $region96
        $region95: #{model_forward.1} parent=91 // pred_region
          _
        $region96: #{model_forward.1} parent=91 // pred_fallthru
          _
        // Predicated region
        $region97: #{model_forward.1} parent=91 // pred_check
          %p1540 = pneg %p480
        $region98: #{model_forward.1} parent=91 // pred_check_branch
          %1542 = sbr.rel (%p1540) target = $region100
        $region99: #{model_forward.1} parent=91 // pred_region
          %1544 = vsyncadd %s1530, 0
          %s1545 = scalar_lea.hbm %s19, %s38
          %s1547 = sshll.u32 %s1532, 4
          %s1548 = int_to_ptr.vmem [resolvable:$true] %s1547
          %s1549 = sshll.u32 %s1545, 4
          %s1550 = int_to_ptr.hbm [resolvable:$true] %s1549
          %1552 = dma.vmem_to_hbm [thread:$0]  %s1548, 16, %s1550, %s1530
        $region100: #{model_forward.1} parent=91 // pred_fallthru
          _
        // Predicated region
        $region101: #{model_forward.1} parent=91 // pred_check
          %p1553 = pneg %p506
        $region102: #{model_forward.1} parent=91 // pred_check_branch
          %1555 = sbr.rel (%p1553) target = $region104
        $region103: #{model_forward.1} parent=91 // pred_region
          %1557 = vsyncadd %s1534, 0
          %s1558 = scalar_lea.hbm %s20, %s38
          %s1560 = sshll.u32 %s1536, 4
          %s1561 = int_to_ptr.vmem [resolvable:$true] %s1560
          %s1562 = sshll.u32 %s1558, 4
          %s1563 = int_to_ptr.hbm [resolvable:$true] %s1562
          %1565 = dma.vmem_to_hbm [thread:$0]  %s1561, 16, %s1563, %s1534
        $region104: #{model_forward.1} parent=91 // pred_fallthru
          _
      $region92: #{model_forward.1} parent=5 // pred_fallthru
        _
      %p1566 = scmp.le.s32.totalorder 2, %s33
      // Predicated region
      $region105: #{model_forward.1} parent=5 // pred_check
        %p1567 = pneg %p1566
      $region106: #{model_forward.1} parent=5 // pred_check_branch
        %1569 = sbr.rel (%p1567) target = $region108
      $region107: #{model_forward.1} parent=5 // pred_region
        %s1570 = ssub.s32 %s33, 2
        // Predicated region
        $region109: #{model_forward.1} parent=107 // pred_check
          %p1571 = pneg %p460
        $region110: #{model_forward.1} parent=107 // pred_check_branch
          %1573 = sbr.rel (%p1571) target = $region112
        $region111: #{model_forward.1} parent=107 // pred_region
          %p1574 = scmp.lt.s32.totalorder %s39, 1
          %s1575 = scalar_select %p1574, %s39, 1
          %s1576 = smul.addr %s1575, 8
          %s1577 = scalar_lea.vmem %s18, %s1576
        $region112: #{model_forward.1} parent=107 // pred_fallthru
          _
        // Predicated region
        $region113: #{model_forward.1} parent=107 // pred_check
          %p1578 = pneg %p486
        $region114: #{model_forward.1} parent=107 // pred_check_branch
          %1580 = sbr.rel (%p1578) target = $region116
        $region115: #{model_forward.1} parent=107 // pred_region
          %s1581 = sand.u32 %s471, 1
          %s1582 = scalar_lea.sflag [#allocation4], %s1581
          %s1583 = sand.u32 %s471, 1
          %s1584 = scalar_lea.vmem [#allocation3], %s1583
          %1586 = dma.done %s1582, 16
        $region116: #{model_forward.1} parent=107 // pred_fallthru
          _
        // Predicated region
        $region117: #{model_forward.1} parent=107 // pred_check
          %p1587 = pneg %p512
        $region118: #{model_forward.1} parent=107 // pred_check_branch
          %1589 = sbr.rel (%p1587) target = $region120
        $region119: #{model_forward.1} parent=107 // pred_region
          %s1590 = sand.u32 %s497, 1
          %s1591 = scalar_lea.sflag [#allocation6], %s1590
          %s1592 = sand.u32 %s497, 1
          %s1593 = scalar_lea.vmem [#allocation5], %s1592
          %1595 = dma.done %s1591, 16
        $region120: #{model_forward.1} parent=107 // pred_fallthru
          _
      $region108: #{model_forward.1} parent=5 // pred_fallthru
        _
    $region6: #{model_forward.1} parent=1 // loop_footer
      %s37 = sadd.s32 1, %s33
    $region7: #{model_forward.1} parent=1 // loop_footer_branch
      %32 = sbr.rel target = $region3
    $region8: #{model_forward.1} parent=1 // loop_exit
      _
    %1596 = vsyncpa [#allocation4], 1
    %s1597 = scalar_lea.sflag [#allocation4], 1
    %1598 = vsyncpa %s1597, 1
    %1599 = vsyncpa [#allocation6], 1
    %s1600 = scalar_lea.sflag [#allocation6], 1
    %1601 = vsyncpa %s1600, 1

</llo_original>
